<compile_context>
chip_gen: v7x
topology: tpu7x:2x2x1
jax: 0.10.0
libtpu: 0.0.40
codegen_flags: <defaults>
</compile_context>

<pallas_src>
import numpy as np
import jax
import jax.numpy as jnp
from jax import lax
from jax.experimental import pallas as pl
from jax.experimental.pallas import tpu as pltpu

CONFIG = dict(sample_rate=16000, n_mfcc=8, n_fft=128, hop_length=32, n_mels=16)


# ----------------------------- constants (match torchaudio, host-side) ------
def _hann_window(n_fft):
    n = np.arange(n_fft)
    return (0.5 - 0.5 * np.cos(2.0 * np.pi * n / n_fft)).astype(np.float32)


def _dft_mats(n_fft):
    n_freq = n_fft // 2 + 1
    n = np.arange(n_fft)[:, None]
    k = np.arange(n_freq)[None, :]
    ang = 2.0 * np.pi * n * k / n_fft
    return np.cos(ang).astype(np.float32), (-np.sin(ang)).astype(np.float32)


def _mel_filterbank(n_freq, n_mels, sample_rate, f_min=0.0, f_max=None):
    # torchaudio melscale_fbanks: HTK mel scale, norm=None
    if f_max is None:
        f_max = sample_rate / 2.0
    all_freqs = np.linspace(0, sample_rate // 2, n_freq)
    hz2mel = lambda f: 2595.0 * np.log10(1.0 + f / 700.0)
    mel2hz = lambda m: 700.0 * (10.0 ** (m / 2595.0) - 1.0)
    m_pts = np.linspace(hz2mel(f_min), hz2mel(f_max), n_mels + 2)
    f_pts = mel2hz(m_pts)
    f_diff = f_pts[1:] - f_pts[:-1]
    slopes = f_pts[None, :] - all_freqs[:, None]
    down = -slopes[:, :-2] / f_diff[:-1]
    up = slopes[:, 2:] / f_diff[1:]
    return np.maximum(0.0, np.minimum(down, up)).astype(np.float32)  # (n_freq, n_mels)


def _dct_matrix(n_mfcc, n_mels):
    # torchaudio _create_dct(norm="ortho"), returned as (n_mels, n_mfcc)
    n = np.arange(n_mels)[None, :]
    k = np.arange(n_mfcc)[:, None]
    dct = np.cos(np.pi / n_mels * (n + 0.5) * k)
    dct[0] *= 1.0 / np.sqrt(2.0)
    dct *= np.sqrt(2.0 / n_mels)
    return dct.T.astype(np.float32)


def _fused_dft_const(config, pad_freq):
    """Window-folded lane-aligned [win*cos | 0 | win*sin | 0] real-DFT matrix."""
    n_fft = config["n_fft"]
    n_freq = n_fft // 2 + 1
    win = _hann_window(n_fft)
    cos_m, sin_m = _dft_mats(n_fft)
    w = np.zeros((n_fft, 2 * pad_freq), np.float32)
    w[:, :n_freq] = cos_m * win[:, None]
    w[:, pad_freq:pad_freq + n_freq] = sin_m * win[:, None]
    return w


# ----------------------------- Pallas kernel --------------------------------
def _make_kernel(BB, FM, n_fblocks, n_chunks, extra, n_fft, pad_freq, n_mels,
                 dft_mode):
    def kernel(*refs):
        if dft_mode == "bf16x3":
            flen_ref, wp_ref, wt_ref, wh_ref, wl_ref, mel_ref, dct_ref, l1_ref = refs
        else:
            flen_ref, wp_ref, wt_ref, wh_ref, mel_ref, dct_ref, l1_ref = refs
            wl_ref = None

        l1_ref[...] = jnp.zeros_like(l1_ref)
        flen = flen_ref[...]                                   # (BB, 1, 1) int32

        def frames(w_ref, off):
            # 8-aligned dynamic window of FM+extra hop-chunks, then rebuild the
            # n_fft-wide frames from n_chunks shifted hop slices (lane concat).
            win = w_ref[:, pl.ds(off, FM + extra), :]          # (BB, FM+extra, hop)
            cols = [win[:, k:k + FM, :] for k in range(n_chunks)]
            return jnp.concatenate(cols, axis=-1).reshape(BB * FM, n_fft)

        def dft(fr):
            if dft_mode == "f32":
                return jnp.dot(fr, wh_ref[...], preferred_element_type=jnp.float32)
            xh = fr.astype(jnp.bfloat16)
            s = jnp.dot(xh, wh_ref[...], preferred_element_type=jnp.float32)
            if dft_mode == "bf16x3":
                # hi/lo error-corrected product: ~f32 accuracy in 3 bf16 passes.
                xl = (fr - xh.astype(jnp.float32)).astype(jnp.bfloat16)
                s = s + jnp.dot(xl, wh_ref[...], preferred_element_type=jnp.float32)
                s = s + jnp.dot(xh, wl_ref[...], preferred_element_type=jnp.float32)
            return s

        def log_mel(fr):
            spec = dft(fr)                                     # (M, 2*pad_freq)
            re = spec[:, :pad_freq]
            im = spec[:, pad_freq:]
            power = re * re + im * im                          # |STFT|^2, lane dense
            mel = jnp.dot(power, mel_ref[...], preferred_element_type=jnp.float32)
            return jnp.log(mel + 1e-6)                         # log_mels=True

        @pl.loop(0, n_fblocks)
        def _(fb):
            off = pl.multiple_of(fb * FM, 8)
            # diff-before-DCT: DCT is linear, so one DCT matmul on the log-mel diff.
            d = log_mel(frames(wp_ref, off)) - log_mel(frames(wt_ref, off))   # (M, n_mels)
            c = jnp.dot(d, dct_ref[...], preferred_element_type=jnp.float32)  # (M, n_mfcc)
            # per-row mask: frame index < valid-frame count for that batch row
            t_idx = lax.broadcasted_iota(jnp.int32, (BB, FM, 1), 1) + off
            mask = (t_idx < flen).astype(jnp.float32).reshape(BB * FM, 1)
            l1_ref[...] += jnp.sum(jnp.abs(c) * mask)

    return kernel


def mfcc_loss(preds, targets, lengths, config=CONFIG, *, block_b=8,
              frames_per_block=512, dft_mode="bf16x3"):
    n_fft, hop = config["n_fft"], config["hop_length"]
    n_mels, n_mfcc = config["n_mels"], config["n_mfcc"]
    assert n_fft % hop == 0, "in-kernel framing assumes hop divides n_fft"
    n_chunks = n_fft // hop
    n_freq = n_fft // 2 + 1
    pad_freq = ((n_freq + 127) // 128) * 128      # lane-aligned half-spectrum width

    B, N = preds.shape
    assert N > n_fft // 2, "reflect padding of n_fft//2 needs N > n_fft//2"
    T = 1 + N // hop                              # frames (center=True)
    T8 = ((T + 7) // 8) * 8
    FM = min(max(8, (frames_per_block // 8) * 8), T8)   # frames per inner block
    n_fblocks = (T8 + FM - 1) // FM
    T_pad = n_fblocks * FM
    extra = ((n_chunks - 1 + 7) // 8) * 8         # window slack, kept 8-aligned
    Tc = T_pad + extra                            # hop-chunks carried per waveform
    L_pad = Tc * hop
    assert L_pad >= N + n_fft

    # Batch tile: keep G >= 2 so both v7x TensorCores get grid steps.  Lower
    # block_b (e.g. 4) on v5e or for multi-second audio to stay inside VMEM.
    BB = max(1, min(block_b, max(1, B // 2)))
    B_pad = ((B + BB - 1) // BB) * BB
    G = B_pad // BB

    # ------------------------- constants -------------------------
    w_np = _fused_dft_const(config, pad_freq)
    if dft_mode == "f32":
        dft_consts = [jnp.asarray(w_np)]
    elif dft_mode == "bf16":
        dft_consts = [jnp.asarray(w_np).astype(jnp.bfloat16)]
    elif dft_mode == "bf16x3":
        w32 = jnp.asarray(w_np)
        wh = w32.astype(jnp.bfloat16)
        wl = (w32 - wh.astype(jnp.float32)).astype(jnp.bfloat16)
        dft_consts = [wh, wl]
    else:
        raise ValueError(f"unknown dft_mode: {dft_mode}")
    mel_np = np.zeros((pad_freq, n_mels), np.float32)
    mel_np[:n_freq] = _mel_filterbank(n_freq, n_mels, config["sample_rate"])
    mel_fb = jnp.asarray(mel_np)
    dct_m = jnp.asarray(_dct_matrix(n_mfcc, n_mels))

    def prep(x):
        # reflect pad (center=True), zero-pad to the chunked length, chunk to hops.
        # TODO(synk): on v7x, a lane-dense (B_pad, Tc//4, 128) host repack plus
        # pltpu.roll-based framing would cut vld/XLU work if frame assembly
        # becomes the critical slot once the DFT matmul runs in bf16.
        xp = jnp.pad(x.astype(jnp.float32), ((0, 0), (n_fft // 2, n_fft // 2)),
                     mode="reflect")
        xp = jnp.pad(xp, ((0, B_pad - B), (0, L_pad - xp.shape[1])))
        return xp.reshape(B_pad, Tc, hop)         # contiguous reshape, no gather

    wp3 = prep(preds)
    wt3 = prep(targets)

    # valid-frame count per batch row; padded rows get 0 (fully masked).
    flen = jnp.minimum(1 + lengths.astype(jnp.int32) // hop, T)
    denom = jnp.float32(n_mfcc) * jnp.sum(flen).astype(jnp.float32)  # == sum(mask)
    flen_pad = jnp.pad(flen, (0, B_pad - B)).reshape(B_pad, 1, 1)

    # Explicit VMEM budget (per-step live set * 2x headroom), clamped so it is
    # always below v7x's 64 MiB physical VMEM (v5e/v6e have 128 MiB).
    rows = BB * FM
    w_bytes = sum(int(c.size) * c.dtype.itemsize for c in dft_consts)
    vmem_est = (2 * 2 * BB * Tc * hop * 4                      # double-buffered wp/wt tiles
                + 2 * (w_bytes + (pad_freq * n_mels + n_mels * n_mfcc) * 4)
                + rows * (2 * n_fft * (4 + 2)                  # frames f32 + bf16 hi/lo
                          + 2 * 2 * pad_freq * 4               # spec (preds & targets)
                          + 2 * pad_freq * 4                   # power
                          + 6 * n_mels * 4))                   # log-mels / d / dct io
    vmem_limit = int(min(max(2 * vmem_est, 32 << 20), 56 << 20))

    rows_total = 2 * B_pad * T_pad
    cost = pl.CostEstimate(
        flops=rows_total * 2 * (n_fft * 2 * pad_freq + pad_freq * n_mels)
              + B_pad * T_pad * 2 * n_mels * n_mfcc,
        transcendentals=rows_total * n_mels,
        bytes_accessed=4 * (2 * B_pad * L_pad + 2 * B_pad + G) + w_bytes
                       + 4 * (pad_freq * n_mels + n_mels * n_mfcc),
    )

    grid_spec = pltpu.PrefetchScalarGridSpec(
        num_scalar_prefetch=0,
        grid=(G,),
        in_specs=[
            pl.BlockSpec((BB, 1, 1), lambda g: (g, 0, 0)),       # valid-frame counts
            pl.BlockSpec((BB, Tc, hop), lambda g: (g, 0, 0)),    # preds  hop-chunks
            pl.BlockSpec((BB, Tc, hop), lambda g: (g, 0, 0)),    # targets hop-chunks
        ] + [
            pl.BlockSpec((n_fft, 2 * pad_freq), lambda g: (0, 0))
            for _ in dft_consts                                  # VMEM-resident DFT const(s)
        ] + [
            pl.BlockSpec((pad_freq, n_mels), lambda g: (0, 0)),  # mel filterbank
            pl.BlockSpec((n_mels, n_mfcc), lambda g: (0, 0)),    # DCT
        ],
        out_specs=pl.BlockSpec((1, 1, 1), lambda g: (g, 0, 0)),
    )

    l1_part = pl.pallas_call(
        _make_kernel(BB, FM, n_fblocks, n_chunks, extra, n_fft, pad_freq,
                     n_mels, dft_mode),
        out_shape=jax.ShapeDtypeStruct((G, 1, 1), jnp.float32),
        grid_spec=grid_spec,
        compiler_params=pltpu.CompilerParams(
            dimension_semantics=("parallel",), vmem_limit_bytes=vmem_limit),
        cost_estimate=cost,
    )(flen_pad, wp3, wt3, *dft_consts, mel_fb, dct_m)

    return jnp.sum(l1_part) / denom


# ----------------------------- pure-JAX reference (independent path) --------
def _frame_ref(x, window, n_fft, hop):
    B, N = x.shape
    pad = n_fft // 2
    T = 1 + N // hop
    xp = jnp.pad(x, ((0, 0), (pad, pad)), mode="reflect")
    idx = jnp.arange(T)[:, None] * hop + jnp.arange(n_fft)[None, :]
    return xp[:, idx] * window  # (B, T, n_fft)


def mfcc_loss_ref(preds, targets, lengths, config=CONFIG):
    n_fft, hop = config["n_fft"], config["hop_length"]
    n_mels, n_mfcc = config["n_mels"], config["n_mfcc"]
    B, N = preds.shape
    T = 1 + N // hop
    n_freq = n_fft // 2 + 1
    P = jax.lax.Precision.HIGHEST   # pin the ground-truth precision explicitly
    window = jnp.asarray(_hann_window(n_fft))
    cos_m, sin_m = map(jnp.asarray, _dft_mats(n_fft))
    mel_fb = jnp.asarray(_mel_filterbank(n_freq, n_mels, config["sample_rate"]))
    dct_m = jnp.asarray(_dct_matrix(n_mfcc, n_mels))

    def mfcc(x):
        fr = _frame_ref(x.astype(jnp.float32), window, n_fft, hop)  # (B,T,F)
        re = jnp.matmul(fr, cos_m, precision=P)
        im = jnp.matmul(fr, sin_m, precision=P)
        mel = jnp.matmul(re * re + im * im, mel_fb, precision=P)
        return jnp.matmul(jnp.log(mel + 1e-6), dct_m, precision=P)  # (B,T,n_mfcc)

    mp, mt = mfcc(preds), mfcc(targets)
    length = jnp.minimum(1 + lengths // hop, T)
    mask = (jnp.arange(T)[None, :, None] < length[:, None, None]).astype(jnp.float32)
    mask = jnp.broadcast_to(mask, mp.shape)
    return jnp.sum(jnp.abs(mp - mt) * mask) / jnp.sum(mask)


if __name__ == "__main__":
    key = jax.random.PRNGKey(0)
    k1, k2, k3, k4 = jax.random.split(key, 4)

    # Case 1: tiny waveforms (T = 9 frames -> one frame block, BB=1, G=2).
    B, N = 2, 256
    preds = jax.random.normal(k1, (B, N), dtype=jnp.float32)
    targets = jax.random.normal(k2, (B, N), dtype=jnp.float32)
    lengths = jnp.array([256, 200], dtype=jnp.int32)
    loss = jax.block_until_ready(mfcc_loss(preds, targets, lengths, CONFIG))
    ref = jax.block_until_ready(mfcc_loss_ref(preds, targets, lengths, CONFIG))
    assert jnp.isfinite(loss), loss
    assert jnp.allclose(loss, ref, rtol=1e-3, atol=1e-3), (loss, ref)

    # Case 2: BB=2 batch tiles, 3 inner frame blocks (exercises the pl.loop /
    # dynamic-slice path), default bf16x3 DFT -> still holds the 1e-3 check.
    B2, N2 = 4, 2048
    p2 = jax.random.normal(k3, (B2, N2), dtype=jnp.float32)
    t2 = jax.random.normal(k4, (B2, N2), dtype=jnp.float32)
    l2 = jnp.array([2048, 1500, 700, 2048], dtype=jnp.int32)
    loss2 = jax.block_until_ready(
        mfcc_loss(p2, t2, l2, CONFIG, block_b=2, frames_per_block=32))
    ref2 = jax.block_until_ready(mfcc_loss_ref(p2, t2, l2, CONFIG))
    assert jnp.allclose(loss2, ref2, rtol=1e-3, atol=1e-3), (loss2, ref2)

    # Case 3: single-pass bf16 DFT fast path (production lever; looser check).
    loss3 = jax.block_until_ready(
        mfcc_loss(p2, t2, l2, CONFIG, block_b=2, frames_per_block=32,
                  dft_mode="bf16"))
    assert jnp.allclose(loss3, ref2, rtol=5e-2, atol=5e-2), (loss3, ref2)

    print("KERNEL_OK")
</pallas_src>

<mosaic_0001>
module attributes {stable_mosaic.version = 11 : i64} {
  func.func @kernel(%arg0: i32, %arg1: memref<1x1x1xi32, #tpu.memory_space<vmem>>, %arg2: memref<1x24x32xf32, #tpu.memory_space<vmem>>, %arg3: memref<1x24x32xf32, #tpu.memory_space<vmem>>, %arg4: memref<128x256xbf16, #tpu.memory_space<vmem>>, %arg5: memref<128x256xbf16, #tpu.memory_space<vmem>>, %arg6: memref<128x16xf32, #tpu.memory_space<vmem>>, %arg7: memref<16x8xf32, #tpu.memory_space<vmem>>, %arg8: memref<1x1x1xf32, #tpu.memory_space<vmem>>) attributes {dimension_semantics = [#tpu.dimension_semantics<parallel>], iteration_bounds = array<i64: 2>, scalar_prefetch = 0 : i64, scratch_operands = 0 : i64, tpu.core_type = #tpu.core_type<tc>, window_params = [{transform_indices = @transform_0, window_bounds = array<i64: 1, 1, 1>}, {transform_indices = @transform_1, window_bounds = array<i64: 1, 24, 32>}, {transform_indices = @transform_2, window_bounds = array<i64: 1, 24, 32>}, {pipeline_mode = #tpu.pipeline_mode<synchronous>, transform_indices = @transform_3, window_bounds = array<i64: 128, 256>}, {pipeline_mode = #tpu.pipeline_mode<synchronous>, transform_indices = @transform_4, window_bounds = array<i64: 128, 256>}, {pipeline_mode = #tpu.pipeline_mode<synchronous>, transform_indices = @transform_5, window_bounds = array<i64: 128, 16>}, {pipeline_mode = #tpu.pipeline_mode<synchronous>, transform_indices = @transform_6, window_bounds = array<i64: 16, 8>}, {transform_indices = @transform_7, window_bounds = array<i64: 1, 1, 1>}]} {
    %cst = arith.constant 0.000000e+00 : f32
    %0 = vector.broadcast %cst : f32 to vector<1x1x1xf32>
    %c0 = arith.constant 0 : index
    %c0_0 = arith.constant 0 : index
    %c0_1 = arith.constant 0 : index
    %1 = vector.load %arg8[%c0, %c0_0, %c0_1] : memref<1x1x1xf32, #tpu.memory_space<vmem>>, vector<1x1x1xf32>
    tpu.vector_store %arg8[%c0, %c0_0, %c0_1], %0 {strides = array<i32>} : memref<1x1x1xf32, #tpu.memory_space<vmem>>, vector<1x1x1xf32>,
    %c0_2 = arith.constant 0 : index
    %c0_3 = arith.constant 0 : index
    %c0_4 = arith.constant 0 : index
    %2 = vector.load %arg1[%c0_2, %c0_3, %c0_4] : memref<1x1x1xi32, #tpu.memory_space<vmem>>, vector<1x1x1xi32>
    %c0_i32 = arith.constant 0 : i32
    %c1_i32 = arith.constant 1 : i32
    %3 = arith.muli %c0_i32, %c1_i32 : i32
    %c0_i32_5 = arith.constant 0 : i32
    %4 = arith.addi %c0_i32_5, %3 : i32
    %c16_i32 = arith.constant 16 : i32
    %5 = arith.muli %4, %c16_i32 : i32
    %6 = tpu.assume_multiple %5, 8 : i32
    %c0_6 = arith.constant 0 : index
    %7 = arith.index_cast %6 : i32 to index
    %c0_7 = arith.constant 0 : index
    %8 = vector.load %arg2[%c0_6, %7, %c0_7] : memref<1x24x32xf32, #tpu.memory_space<vmem>>, vector<1x24x32xf32>
    %9 = vector.extract_strided_slice %8 {offsets = [0, 0, 0], sizes = [1, 16, 32], strides = [1, 1, 1]} : vector<1x24x32xf32> to vector<1x16x32xf32>
    %10 = vector.extract_strided_slice %8 {offsets = [0, 1, 0], sizes = [1, 16, 32], strides = [1, 1, 1]} : vector<1x24x32xf32> to vector<1x16x32xf32>
    %11 = vector.extract_strided_slice %8 {offsets = [0, 2, 0], sizes = [1, 16, 32], strides = [1, 1, 1]} : vector<1x24x32xf32> to vector<1x16x32xf32>
    %12 = vector.extract_strided_slice %8 {offsets = [0, 3, 0], sizes = [1, 16, 32], strides = [1, 1, 1]} : vector<1x24x32xf32> to vector<1x16x32xf32>
    %13 = tpu.concatenate %9, %10, %11, %12 in 2 : vector<1x16x32xf32>, vector<1x16x32xf32>, vector<1x16x32xf32>, vector<1x16x32xf32> -> vector<1x16x128xf32>
    %14 = vector.shape_cast %13 : vector<1x16x128xf32> to vector<16x128xf32>
    %15 = arith.truncf %14 : vector<16x128xf32> to vector<16x128xbf16>
    %c0_8 = arith.constant 0 : index
    %c0_9 = arith.constant 0 : index
    %16 = vector.load %arg4[%c0_8, %c0_9] : memref<128x256xbf16, #tpu.memory_space<vmem>>, vector<128x256xbf16>
    %cst_10 = arith.constant dense<0.000000e+00> : vector<16x256xf32>
    %17 = tpu.matmul %15, %16, %cst_10 {dimension_numbers = #tpu.dot_dimension_numbers<[1], [0], [0], [1], [0, 0, 1, 1], [], []>} : vector<16x128xbf16>, vector<128x256xbf16>, vector<16x256xf32> -> vector<16x256xf32>
    %18 = arith.extf %15 : vector<16x128xbf16> to vector<16x128xf32>
    %19 = arith.subf %14, %18 : vector<16x128xf32>
    %20 = arith.truncf %19 : vector<16x128xf32> to vector<16x128xbf16>
    %c0_11 = arith.constant 0 : index
    %c0_12 = arith.constant 0 : index
    %21 = vector.load %arg4[%c0_11, %c0_12] : memref<128x256xbf16, #tpu.memory_space<vmem>>, vector<128x256xbf16>
    %cst_13 = arith.constant dense<0.000000e+00> : vector<16x256xf32>
    %22 = tpu.matmul %20, %21, %cst_13 {dimension_numbers = #tpu.dot_dimension_numbers<[1], [0], [0], [1], [0, 0, 1, 1], [], []>} : vector<16x128xbf16>, vector<128x256xbf16>, vector<16x256xf32> -> vector<16x256xf32>
    %23 = arith.addf %17, %22 : vector<16x256xf32>
    %c0_14 = arith.constant 0 : index
    %c0_15 = arith.constant 0 : index
    %24 = vector.load %arg5[%c0_14, %c0_15] : memref<128x256xbf16, #tpu.memory_space<vmem>>, vector<128x256xbf16>
    %cst_16 = arith.constant dense<0.000000e+00> : vector<16x256xf32>
    %25 = tpu.matmul %15, %24, %cst_16 {dimension_numbers = #tpu.dot_dimension_numbers<[1], [0], [0], [1], [0, 0, 1, 1], [], []>} : vector<16x128xbf16>, vector<128x256xbf16>, vector<16x256xf32> -> vector<16x256xf32>
    %26 = arith.addf %23, %25 : vector<16x256xf32>
    %27 = vector.extract_strided_slice %26 {offsets = [0, 0], sizes = [16, 128], strides = [1, 1]} : vector<16x256xf32> to vector<16x128xf32>
    %28 = vector.extract_strided_slice %26 {offsets = [0, 128], sizes = [16, 128], strides = [1, 1]} : vector<16x256xf32> to vector<16x128xf32>
    %29 = arith.mulf %27, %27 : vector<16x128xf32>
    %30 = arith.mulf %28, %28 : vector<16x128xf32>
    %31 = arith.addf %29, %30 : vector<16x128xf32>
    %c0_17 = arith.constant 0 : index
    %c0_18 = arith.constant 0 : index
    %32 = vector.load %arg6[%c0_17, %c0_18] : memref<128x16xf32, #tpu.memory_space<vmem>>, vector<128x16xf32>
    %cst_19 = arith.constant dense<0.000000e+00> : vector<16x16xf32>
    %33 = tpu.matmul %31, %32, %cst_19 {dimension_numbers = #tpu.dot_dimension_numbers<[1], [0], [0], [1], [0, 0, 1, 1], [], []>} : vector<16x128xf32>, vector<128x16xf32>, vector<16x16xf32> -> vector<16x16xf32>
    %cst_20 = arith.constant 9.99999997E-7 : f32
    %34 = vector.broadcast %cst_20 : f32 to vector<16x16xf32>
    %35 = arith.addf %33, %34 : vector<16x16xf32>
    %36 = math.log %35 : vector<16x16xf32>
    %c0_21 = arith.constant 0 : index
    %37 = arith.index_cast %6 : i32 to index
    %c0_22 = arith.constant 0 : index
    %38 = vector.load %arg3[%c0_21, %37, %c0_22] : memref<1x24x32xf32, #tpu.memory_space<vmem>>, vector<1x24x32xf32>
    %39 = vector.extract_strided_slice %38 {offsets = [0, 0, 0], sizes = [1, 16, 32], strides = [1, 1, 1]} : vector<1x24x32xf32> to vector<1x16x32xf32>
    %40 = vector.extract_strided_slice %38 {offsets = [0, 1, 0], sizes = [1, 16, 32], strides = [1, 1, 1]} : vector<1x24x32xf32> to vector<1x16x32xf32>
    %41 = vector.extract_strided_slice %38 {offsets = [0, 2, 0], sizes = [1, 16, 32], strides = [1, 1, 1]} : vector<1x24x32xf32> to vector<1x16x32xf32>
    %42 = vector.extract_strided_slice %38 {offsets = [0, 3, 0], sizes = [1, 16, 32], strides = [1, 1, 1]} : vector<1x24x32xf32> to vector<1x16x32xf32>
    %43 = tpu.concatenate %39, %40, %41, %42 in 2 : vector<1x16x32xf32>, vector<1x16x32xf32>, vector<1x16x32xf32>, vector<1x16x32xf32> -> vector<1x16x128xf32>
    %44 = vector.shape_cast %43 : vector<1x16x128xf32> to vector<16x128xf32>
    %45 = arith.truncf %44 : vector<16x128xf32> to vector<16x128xbf16>
    %c0_23 = arith.constant 0 : index
    %c0_24 = arith.constant 0 : index
    %46 = vector.load %arg4[%c0_23, %c0_24] : memref<128x256xbf16, #tpu.memory_space<vmem>>, vector<128x256xbf16>
    %cst_25 = arith.constant dense<0.000000e+00> : vector<16x256xf32>
    %47 = tpu.matmul %45, %46, %cst_25 {dimension_numbers = #tpu.dot_dimension_numbers<[1], [0], [0], [1], [0, 0, 1, 1], [], []>} : vector<16x128xbf16>, vector<128x256xbf16>, vector<16x256xf32> -> vector<16x256xf32>
    %48 = arith.extf %45 : vector<16x128xbf16> to vector<16x128xf32>
    %49 = arith.subf %44, %48 : vector<16x128xf32>
    %50 = arith.truncf %49 : vector<16x128xf32> to vector<16x128xbf16>
    %c0_26 = arith.constant 0 : index
    %c0_27 = arith.constant 0 : index
    %51 = vector.load %arg4[%c0_26, %c0_27] : memref<128x256xbf16, #tpu.memory_space<vmem>>, vector<128x256xbf16>
    %cst_28 = arith.constant dense<0.000000e+00> : vector<16x256xf32>
    %52 = tpu.matmul %50, %51, %cst_28 {dimension_numbers = #tpu.dot_dimension_numbers<[1], [0], [0], [1], [0, 0, 1, 1], [], []>} : vector<16x128xbf16>, vector<128x256xbf16>, vector<16x256xf32> -> vector<16x256xf32>
    %53 = arith.addf %47, %52 : vector<16x256xf32>
    %c0_29 = arith.constant 0 : index
    %c0_30 = arith.constant 0 : index
    %54 = vector.load %arg5[%c0_29, %c0_30] : memref<128x256xbf16, #tpu.memory_space<vmem>>, vector<128x256xbf16>
    %cst_31 = arith.constant dense<0.000000e+00> : vector<16x256xf32>
    %55 = tpu.matmul %45, %54, %cst_31 {dimension_numbers = #tpu.dot_dimension_numbers<[1], [0], [0], [1], [0, 0, 1, 1], [], []>} : vector<16x128xbf16>, vector<128x256xbf16>, vector<16x256xf32> -> vector<16x256xf32>
    %56 = arith.addf %53, %55 : vector<16x256xf32>
    %57 = vector.extract_strided_slice %56 {offsets = [0, 0], sizes = [16, 128], strides = [1, 1]} : vector<16x256xf32> to vector<16x128xf32>
    %58 = vector.extract_strided_slice %56 {offsets = [0, 128], sizes = [16, 128], strides = [1, 1]} : vector<16x256xf32> to vector<16x128xf32>
    %59 = arith.mulf %57, %57 : vector<16x128xf32>
    %60 = arith.mulf %58, %58 : vector<16x128xf32>
    %61 = arith.addf %59, %60 : vector<16x128xf32>
    %c0_32 = arith.constant 0 : index
    %c0_33 = arith.constant 0 : index
    %62 = vector.load %arg6[%c0_32, %c0_33] : memref<128x16xf32, #tpu.memory_space<vmem>>, vector<128x16xf32>
    %cst_34 = arith.constant dense<0.000000e+00> : vector<16x16xf32>
    %63 = tpu.matmul %61, %62, %cst_34 {dimension_numbers = #tpu.dot_dimension_numbers<[1], [0], [0], [1], [0, 0, 1, 1], [], []>} : vector<16x128xf32>, vector<128x16xf32>, vector<16x16xf32> -> vector<16x16xf32>
    %cst_35 = arith.constant 9.99999997E-7 : f32
    %64 = vector.broadcast %cst_35 : f32 to vector<16x16xf32>
    %65 = arith.addf %63, %64 : vector<16x16xf32>
    %66 = math.log %65 : vector<16x16xf32>
    %67 = arith.subf %36, %66 : vector<16x16xf32>
    %c0_36 = arith.constant 0 : index
    %c0_37 = arith.constant 0 : index
    %68 = vector.load %arg7[%c0_36, %c0_37] : memref<16x8xf32, #tpu.memory_space<vmem>>, vector<16x8xf32>
    %cst_38 = arith.constant dense<0.000000e+00> : vector<16x8xf32>
    %69 = tpu.matmul %67, %68, %cst_38 {dimension_numbers = #tpu.dot_dimension_numbers<[1], [0], [0], [1], [0, 0, 1, 1], [], []>} : vector<16x16xf32>, vector<16x8xf32>, vector<16x8xf32> -> vector<16x8xf32>
    %70 = tpu.iota {dimensions = array<i32: 1>} : vector<1x16x1xi32>
    %71 = vector.broadcast %6 : i32 to vector<1x16x1xi32>
    %72 = arith.addi %70, %71 : vector<1x16x1xi32>
    %73 = vector.broadcast %2 : vector<1x1x1xi32> to vector<1x16x1xi32>
    %74 = arith.cmpi slt, %72, %73 : vector<1x16x1xi32>
    %75 = arith.extui %74 : vector<1x16x1xi1> to vector<1x16x1xi32>
    %76 = arith.sitofp %75 : vector<1x16x1xi32> to vector<1x16x1xf32>
    %77 = vector.shape_cast %76 : vector<1x16x1xf32> to vector<16x1xf32>
    %c0_39 = arith.constant 0 : index
    %c0_40 = arith.constant 0 : index
    %c0_41 = arith.constant 0 : index
    %78 = vector.load %arg8[%c0_39, %c0_40, %c0_41] : memref<1x1x1xf32, #tpu.memory_space<vmem>>, vector<1x1x1xf32>
    %79 = math.absf %69 : vector<16x8xf32>
    %80 = vector.broadcast %77 : vector<16x1xf32> to vector<16x8xf32>
    %81 = arith.mulf %79, %80 : vector<16x8xf32>
    %82 = vector.shape_cast %81 : vector<16x8xf32> to vector<1x16x8xf32>
    %cst_42 = arith.constant dense<0.000000e+00> : vector<1xf32>
    %83 = vector.multi_reduction <add>, %82, %cst_42 [1, 2] : vector<1x16x8xf32> to vector<1xf32>
    %84 = vector.shape_cast %83 : vector<1xf32> to vector<1x1x1xf32>
    %85 = vector.extract %84[0, 0, 0] : f32 from vector<1x1x1xf32>
    %86 = vector.broadcast %85 : f32 to vector<1x1x1xf32>
    %87 = arith.addf %78, %86 : vector<1x1x1xf32>
    %c0_43 = arith.constant 0 : index
    %c0_44 = arith.constant 0 : index
    %c0_45 = arith.constant 0 : index
    %88 = vector.load %arg8[%c0_43, %c0_44, %c0_45] : memref<1x1x1xf32, #tpu.memory_space<vmem>>, vector<1x1x1xf32>
    tpu.vector_store %arg8[%c0_43, %c0_44, %c0_45], %87 {strides = array<i32>} : memref<1x1x1xf32, #tpu.memory_space<vmem>>, vector<1x1x1xf32>,
    %c1_i32_46 = arith.constant 1 : i32
    return
  }
  func.func @transform_0(%arg0: i32) -> (i32, i32, i32) {
    %c0_i32 = arith.constant 0 : i32
    %c0_i32_0 = arith.constant 0 : i32
    %c0_i32_1 = arith.constant 0 : i32
    return %arg0, %c0_i32, %c0_i32_0 : i32, i32, i32
  }
  func.func @transform_1(%arg0: i32) -> (i32, i32, i32) {
    %c0_i32 = arith.constant 0 : i32
    %c0_i32_0 = arith.constant 0 : i32
    %c0_i32_1 = arith.constant 0 : i32
    return %arg0, %c0_i32, %c0_i32_0 : i32, i32, i32
  }
  func.func @transform_2(%arg0: i32) -> (i32, i32, i32) {
    %c0_i32 = arith.constant 0 : i32
    %c0_i32_0 = arith.constant 0 : i32
    %c0_i32_1 = arith.constant 0 : i32
    return %arg0, %c0_i32, %c0_i32_0 : i32, i32, i32
  }
  func.func @transform_3(%arg0: i32) -> (i32, i32) {
    %c0_i32 = arith.constant 0 : i32
    %c0_i32_0 = arith.constant 0 : i32
    %c0_i32_1 = arith.constant 0 : i32
    return %c0_i32, %c0_i32_0 : i32, i32
  }
  func.func @transform_4(%arg0: i32) -> (i32, i32) {
    %c0_i32 = arith.constant 0 : i32
    %c0_i32_0 = arith.constant 0 : i32
    %c0_i32_1 = arith.constant 0 : i32
    return %c0_i32, %c0_i32_0 : i32, i32
  }
  func.func @transform_5(%arg0: i32) -> (i32, i32) {
    %c0_i32 = arith.constant 0 : i32
    %c0_i32_0 = arith.constant 0 : i32
    %c0_i32_1 = arith.constant 0 : i32
    return %c0_i32, %c0_i32_0 : i32, i32
  }
  func.func @transform_6(%arg0: i32) -> (i32, i32) {
    %c0_i32 = arith.constant 0 : i32
    %c0_i32_0 = arith.constant 0 : i32
    %c0_i32_1 = arith.constant 0 : i32
    return %c0_i32, %c0_i32_0 : i32, i32
  }
  func.func @transform_7(%arg0: i32) -> (i32, i32, i32) {
    %c0_i32 = arith.constant 0 : i32
    %c0_i32_0 = arith.constant 0 : i32
    %c0_i32_1 = arith.constant 0 : i32
    return %arg0, %c0_i32, %c0_i32_0 : i32, i32, i32
  }
}

</mosaic_0001>

<llo_original>
// kernel: tpu_custom_call.1
$region0: #{tpu_custom_call.1}
  #allocation0 [shape = 'u32[]', space=smem, size = 0x4, offset = 0x4, fixed_abs, tag = 'smem constant byte address 0x4 - core index']
  #allocation1 [shape = 'u32[144,128]{1,0:T(1,128)}', space=vmem, size = 0x12000, scoped, tag = 'internal scratch']
  %s0 = inlined_call_operand.vmem [shape: s32[2,1,1], index: 0, kind: input, shape index: {}]
  %s1 = inlined_call_operand.vmem [shape: f32[2,24,32], index: 1, kind: input, shape index: {}]
  %s2 = inlined_call_operand.hbm [shape: f32[2,24,32], index: 2, kind: input, shape index: {}]
  %s3 = inlined_call_operand.vmem [shape: bf16[128,256], index: 3, kind: input, shape index: {}]
  %s4 = inlined_call_operand.hbm [shape: bf16[128,256], index: 4, kind: input, shape index: {}]
  %s5 = inlined_call_operand.vmem [shape: f32[128,16], index: 5, kind: input, shape index: {}]
  %s6 = inlined_call_operand.vmem [shape: f32[16,8], index: 6, kind: input, shape index: {}]
  %s7 = inlined_call_operand.vmem [shape: f32[2,1,1], index: 7, kind: output, shape index: {}]
  %s8 = sld [smem:[#allocation0]]
  $region69: #{tpu_custom_call.1} parent=0
    _
  %s10 = ssub.s32 1, %s8
  %s11 = scalar_select 0, %s10, %s8
  $region1: #{tpu_custom_call.1} parent=0
    #allocation2 [shape = 'u8[24576]{0}', space=vmem, size = 0x6000, scoped, tag = 'input window, operand 2']
    #allocation3 [shape = 's32[2]{0}', space=sflag, size = 0x8, scoped, tag = 'scoped memory for tpu_custom_call.1']
    #allocation4 [shape = 'u8[65536]{0}', space=vmem, size = 0x10000, scoped, tag = 'input window, operand 4, single buffered']
    #allocation5 [shape = 's32[1]{0}', space=sflag, size = 0x4, scoped, tag = 'scoped memory for tpu_custom_call.1']
    %12 = vsyncpa [#allocation3], 0
    %s13 = scalar_lea.sflag [#allocation3], 1
    %14 = vsyncpa %s13, 0
    %15 = vsyncpa [#allocation5], 0
    loop: start=0, step=1, limit=4
    $region2: #{tpu_custom_call.1} parent=1 // loop_pre_header
      _
    $region3: #{tpu_custom_call.1} parent=1 // loop_header
      %s17 = sphi 0, %s21
      %p18 = scmp.ge.s32.totalorder %s17, 4
      %s27 = sphi 0, %s29
      %s30 = sphi 0, %s27
      %s31 = sphi 0, %s30
      %s47 = sphi 0, %s31
      %s53 = sphi 0, %s55
      %s56 = sphi 0, %s53
      %s57 = sphi 0, %s56
      %s73 = sphi 0, %s57
      %s79 = sphi 0, %s81
      %s82 = sphi 0, %s79
      %s83 = sphi 0, %s82
      %s99 = sphi 0, %s83
      %s103 = sphi 0, %s103
      %s105 = sphi 0, %s103
      %s106 = sphi 0, %s105
      %s120 = sphi 0, %s106
      %s124 = sphi 0, %s124
      %s126 = sphi 0, %s124
      %s127 = sphi 0, %s126
      %s141 = sphi 0, %s127
      %s145 = sphi 0, %s145
      %s147 = sphi 0, %s145
      %s148 = sphi 0, %s147
      %s162 = sphi 0, %s148
      %s166 = sphi 0, %s166
      %s168 = sphi 0, %s166
      %s169 = sphi 0, %s168
      %s183 = sphi 0, %s169
      %s189 = sphi 0, %s191
      %s192 = sphi 0, %s189
      %s193 = sphi 0, %s192
      %s209 = sphi 0, %s193
    $region4: #{tpu_custom_call.1} parent=1 // loop_header_branch
      %20 = sbr.rel (%p18) target = $region8
    $region5: #{tpu_custom_call.1} parent=1 // loop_body
      %s22 = ssub.s32 %s17, 1
      %s23 = ssub.s32 %s17, 2
      %s24 = sadd.s32 %s17, 1
      %s25 = ssub.s32 %s17, %s24
      %p26 = scmp.eq.s32.totalorder %s25, 0
      %s28 = sadd.s32 %s27, 1
      %s29 = scalar_select %p26, %s27, %s28
      %p32 = pneg %p26
      %p33 = scmp.eq.s32.totalorder %s17, 1
      %p34 = por %p32, %p33
      %p35 = scmp.ne.s32.totalorder %s27, %s30
      %p36 = scmp.eq.s32.totalorder %s17, 0
      %p37 = por %p35, %p36
      %p38 = scmp.ne.s32.totalorder %s27, %s30
      %p39 = scmp.eq.s32.totalorder %s22, 1
      %p40 = por %p38, %p39
      %p41 = scmp.ne.s32.totalorder %s30, %s31
      %p42 = scmp.eq.s32.totalorder %s22, 0
      %p43 = por %p41, %p42
      %p44 = scmp.ne.s32.totalorder %s30, %s31
      %p45 = scmp.eq.s32.totalorder %s23, 1
      %p46 = por %p44, %p45
      %p48 = scmp.ne.s32.totalorder %s31, %s47
      %p49 = scmp.eq.s32.totalorder %s23, 0
      %p50 = por %p48, %p49
      %s51 = ssub.s32 %s17, %s24
      %p52 = scmp.eq.s32.totalorder %s51, 0
      %s54 = sadd.s32 %s53, 1
      %s55 = scalar_select %p52, %s53, %s54
      %p58 = pneg %p52
      %p59 = scmp.eq.s32.totalorder %s17, 1
      %p60 = por %p58, %p59
      %p61 = scmp.ne.s32.totalorder %s53, %s56
      %p62 = scmp.eq.s32.totalorder %s17, 0
      %p63 = por %p61, %p62
      %p64 = scmp.ne.s32.totalorder %s53, %s56
      %p65 = scmp.eq.s32.totalorder %s22, 1
      %p66 = por %p64, %p65
      %p67 = scmp.ne.s32.totalorder %s56, %s57
      %p68 = scmp.eq.s32.totalorder %s22, 0
      %p69 = por %p67, %p68
      %p70 = scmp.ne.s32.totalorder %s56, %s57
      %p71 = scmp.eq.s32.totalorder %s23, 1
      %p72 = por %p70, %p71
      %p74 = scmp.ne.s32.totalorder %s57, %s73
      %p75 = scmp.eq.s32.totalorder %s23, 0
      %p76 = por %p74, %p75
      %s77 = ssub.s32 %s17, %s24
      %p78 = scmp.eq.s32.totalorder %s77, 0
      %s80 = sadd.s32 %s79, 1
      %s81 = scalar_select %p78, %s79, %s80
      %p84 = pneg %p78
      %p85 = scmp.eq.s32.totalorder %s17, 1
      %p86 = por %p84, %p85
      %p87 = scmp.ne.s32.totalorder %s79, %s82
      %p88 = scmp.eq.s32.totalorder %s17, 0
      %p89 = por %p87, %p88
      %p90 = scmp.ne.s32.totalorder %s79, %s82
      %p91 = scmp.eq.s32.totalorder %s22, 1
      %p92 = por %p90, %p91
      %p93 = scmp.ne.s32.totalorder %s82, %s83
      %p94 = scmp.eq.s32.totalorder %s22, 0
      %p95 = por %p93, %p94
      %p96 = scmp.ne.s32.totalorder %s82, %s83
      %p97 = scmp.eq.s32.totalorder %s23, 1
      %p98 = por %p96, %p97
      %p100 = scmp.ne.s32.totalorder %s83, %s99
      %p101 = scmp.eq.s32.totalorder %s23, 0
      %p102 = por %p100, %p101
      %s104 = sadd.s32 %s103, 1
      %p107 = scmp.eq.s32.totalorder %s17, 1
      %p108 = scmp.ne.s32.totalorder %s103, %s105
      %p109 = scmp.eq.s32.totalorder %s17, 0
      %p110 = por %p108, %p109
      %p111 = scmp.ne.s32.totalorder %s103, %s105
      %p112 = scmp.eq.s32.totalorder %s22, 1
      %p113 = por %p111, %p112
      %p114 = scmp.ne.s32.totalorder %s105, %s106
      %p115 = scmp.eq.s32.totalorder %s22, 0
      %p116 = por %p114, %p115
      %p117 = scmp.ne.s32.totalorder %s105, %s106
      %p118 = scmp.eq.s32.totalorder %s23, 1
      %p119 = por %p117, %p118
      %p121 = scmp.ne.s32.totalorder %s106, %s120
      %p122 = scmp.eq.s32.totalorder %s23, 0
      %p123 = por %p121, %p122
      %s125 = sadd.s32 %s124, 1
      %p128 = scmp.eq.s32.totalorder %s17, 1
      %p129 = scmp.ne.s32.totalorder %s124, %s126
      %p130 = scmp.eq.s32.totalorder %s17, 0
      %p131 = por %p129, %p130
      %p132 = scmp.ne.s32.totalorder %s124, %s126
      %p133 = scmp.eq.s32.totalorder %s22, 1
      %p134 = por %p132, %p133
      %p135 = scmp.ne.s32.totalorder %s126, %s127
      %p136 = scmp.eq.s32.totalorder %s22, 0
      %p137 = por %p135, %p136
      %p138 = scmp.ne.s32.totalorder %s126, %s127
      %p139 = scmp.eq.s32.totalorder %s23, 1
      %p140 = por %p138, %p139
      %p142 = scmp.ne.s32.totalorder %s127, %s141
      %p143 = scmp.eq.s32.totalorder %s23, 0
      %p144 = por %p142, %p143
      %s146 = sadd.s32 %s145, 1
      %p149 = scmp.eq.s32.totalorder %s17, 1
      %p150 = scmp.ne.s32.totalorder %s145, %s147
      %p151 = scmp.eq.s32.totalorder %s17, 0
      %p152 = por %p150, %p151
      %p153 = scmp.ne.s32.totalorder %s145, %s147
      %p154 = scmp.eq.s32.totalorder %s22, 1
      %p155 = por %p153, %p154
      %p156 = scmp.ne.s32.totalorder %s147, %s148
      %p157 = scmp.eq.s32.totalorder %s22, 0
      %p158 = por %p156, %p157
      %p159 = scmp.ne.s32.totalorder %s147, %s148
      %p160 = scmp.eq.s32.totalorder %s23, 1
      %p161 = por %p159, %p160
      %p163 = scmp.ne.s32.totalorder %s148, %s162
      %p164 = scmp.eq.s32.totalorder %s23, 0
      %p165 = por %p163, %p164
      %s167 = sadd.s32 %s166, 1
      %p170 = scmp.eq.s32.totalorder %s17, 1
      %p171 = scmp.ne.s32.totalorder %s166, %s168
      %p172 = scmp.eq.s32.totalorder %s17, 0
      %p173 = por %p171, %p172
      %p174 = scmp.ne.s32.totalorder %s166, %s168
      %p175 = scmp.eq.s32.totalorder %s22, 1
      %p176 = por %p174, %p175
      %p177 = scmp.ne.s32.totalorder %s168, %s169
      %p178 = scmp.eq.s32.totalorder %s22, 0
      %p179 = por %p177, %p178
      %p180 = scmp.ne.s32.totalorder %s168, %s169
      %p181 = scmp.eq.s32.totalorder %s23, 1
      %p182 = por %p180, %p181
      %p184 = scmp.ne.s32.totalorder %s169, %s183
      %p185 = scmp.eq.s32.totalorder %s23, 0
      %p186 = por %p184, %p185
      %s187 = ssub.s32 %s17, %s24
      %p188 = scmp.eq.s32.totalorder %s187, 0
      %s190 = sadd.s32 %s189, 1
      %s191 = scalar_select %p188, %s189, %s190
      %p194 = pneg %p188
      %p195 = scmp.eq.s32.totalorder %s17, 1
      %p196 = por %p194, %p195
      %p197 = scmp.ne.s32.totalorder %s189, %s192
      %p198 = scmp.eq.s32.totalorder %s17, 0
      %p199 = por %p197, %p198
      %p200 = scmp.ne.s32.totalorder %s189, %s192
      %p201 = scmp.eq.s32.totalorder %s22, 1
      %p202 = por %p200, %p201
      %p203 = scmp.ne.s32.totalorder %s192, %s193
      %p204 = scmp.eq.s32.totalorder %s22, 0
      %p205 = por %p203, %p204
      %p206 = scmp.ne.s32.totalorder %s192, %s193
      %p207 = scmp.eq.s32.totalorder %s23, 1
      %p208 = por %p206, %p207
      %p210 = scmp.ne.s32.totalorder %s193, %s209
      %p211 = scmp.eq.s32.totalorder %s23, 0
      %p212 = por %p210, %p211
      %p213 = scmp.le.s32.totalorder 1, %s17
      %p214 = scmp.lt.s32.totalorder %s17, 3
      %p215 = pnand %p213, %p214
      %p216 = pneg %p215
      // Predicated region
      $region9: #{tpu_custom_call.1} parent=5 // pred_check
        _
      $region10: #{tpu_custom_call.1} parent=5 // pred_check_branch
        %218 = sbr.rel (%p215) target = $region12
      $region11: #{tpu_custom_call.1} parent=5 // pred_region
        %s219 = ssub.s32 %s17, 1
        // Predicated region
        $region13: #{tpu_custom_call.1} parent=11 // pred_check
          %p220 = pneg %p116
        $region14: #{tpu_custom_call.1} parent=11 // pred_check_branch
          %222 = sbr.rel (%p220) target = $region16
        $region15: #{tpu_custom_call.1} parent=11 // pred_region
          _
        $region16: #{tpu_custom_call.1} parent=11 // pred_fallthru
          _
        // Predicated region
        $region17: #{tpu_custom_call.1} parent=11 // pred_check
          %p223 = pneg %p137
        $region18: #{tpu_custom_call.1} parent=11 // pred_check_branch
          %225 = sbr.rel (%p223) target = $region20
        $region19: #{tpu_custom_call.1} parent=11 // pred_region
          %s227 = ssub.s32 2048, 2048
          %228 = vsyncadd [#allocation5], %s227
          %s229 = sshll.u32 [#allocation4], 4
          %s230 = int_to_ptr.vmem [resolvable:$true] %s229
          %235 = dma.hbm_to_vmem [thread:$0]  %s4, 2048, %s230, [#allocation5], 128, 128, 8
        $region20: #{tpu_custom_call.1} parent=11 // pred_fallthru
          _
        // Predicated region
        $region21: #{tpu_custom_call.1} parent=11 // pred_check
          %p236 = pneg %p158
        $region22: #{tpu_custom_call.1} parent=11 // pred_check_branch
          %238 = sbr.rel (%p236) target = $region24
        $region23: #{tpu_custom_call.1} parent=11 // pred_region
          _
        $region24: #{tpu_custom_call.1} parent=11 // pred_fallthru
          _
        // Predicated region
        $region25: #{tpu_custom_call.1} parent=11 // pred_check
          %p239 = pneg %p179
        $region26: #{tpu_custom_call.1} parent=11 // pred_check_branch
          %241 = sbr.rel (%p239) target = $region28
        $region27: #{tpu_custom_call.1} parent=11 // pred_region
          _
        $region28: #{tpu_custom_call.1} parent=11 // pred_fallthru
          _
      $region12: #{tpu_custom_call.1} parent=5 // pred_fallthru
        _
      %p242 = scmp.lt.s32.totalorder %s17, 2
      // Predicated region
      $region29: #{tpu_custom_call.1} parent=5 // pred_check
        %p243 = pneg %p242
      $region30: #{tpu_custom_call.1} parent=5 // pred_check_branch
        %245 = sbr.rel (%p243) target = $region32
      $region31: #{tpu_custom_call.1} parent=5 // pred_region
        // Predicated region
        $region33: #{tpu_custom_call.1} parent=31 // pred_check
          %p246 = pneg %p37
        $region34: #{tpu_custom_call.1} parent=31 // pred_check_branch
          %248 = sbr.rel (%p246) target = $region36
        $region35: #{tpu_custom_call.1} parent=31 // pred_region
          %p249 = scmp.lt.s32.totalorder %s17, 1
          %s250 = scalar_select %p249, %s17, 1
          %s251 = scalar_lea.vmem %s0, %s250
        $region36: #{tpu_custom_call.1} parent=31 // pred_fallthru
          _
        // Predicated region
        $region37: #{tpu_custom_call.1} parent=31 // pred_check
          %p252 = pneg %p63
        $region38: #{tpu_custom_call.1} parent=31 // pred_check_branch
          %254 = sbr.rel (%p252) target = $region40
        $region39: #{tpu_custom_call.1} parent=31 // pred_region
          %p255 = scmp.lt.s32.totalorder %s17, 1
          %s256 = scalar_select %p255, %s17, 1
          %s257 = smul.addr %s256, 3
          %s258 = smul.addr %s257, 8
          %s259 = scalar_lea.vmem %s1, %s258
        $region40: #{tpu_custom_call.1} parent=31 // pred_fallthru
          _
        // Predicated region
        $region41: #{tpu_custom_call.1} parent=31 // pred_check
          %p260 = pneg %p89
        $region42: #{tpu_custom_call.1} parent=31 // pred_check_branch
          %262 = sbr.rel (%p260) target = $region44
        $region43: #{tpu_custom_call.1} parent=31 // pred_region
          %s263 = sand.u32 %s79, 1
          %s264 = scalar_lea.sflag [#allocation3], %s263
          %s265 = sand.u32 %s79, 1
          %s266 = smul.addr %s265, 24
          %s267 = scalar_lea.vmem [#allocation2], %s266
          %s269 = ssub.s32 384, 384
          %270 = vsyncadd %s264, %s269
          %s271 = smul.addr %s17, 3
          %s272 = smul.addr %s271, 128
          %s273 = scalar_lea.hbm %s2, %s272
          %s274 = sshll.u32 %s267, 4
          %s275 = int_to_ptr.vmem [resolvable:$true] %s274
          %280 = dma.hbm_to_vmem [thread:$0]  %s273, 384, %s275, %s264, 128, 128, 8
        $region44: #{tpu_custom_call.1} parent=31 // pred_fallthru
          _
      $region32: #{tpu_custom_call.1} parent=5 // pred_fallthru
        _
      %p281 = scmp.le.s32.totalorder 1, %s17
      %p282 = scmp.lt.s32.totalorder %s17, 3
      %p283 = pnand %p281, %p282
      %p284 = pneg %p283
      // Predicated region
      $region45: #{tpu_custom_call.1} parent=5 // pred_check
        _
      $region46: #{tpu_custom_call.1} parent=5 // pred_check_branch
        %286 = sbr.rel (%p283) target = $region48
      $region47: #{tpu_custom_call.1} parent=5 // pred_region
        %s287 = ssub.s32 %s17, 1
        %s288 = sand.u32 %s82, 1
        %s289 = scalar_lea.sflag [#allocation3], %s288
        %s290 = sand.u32 %s82, 1
        %s291 = smul.addr %s290, 24
        %s292 = scalar_lea.vmem [#allocation2], %s291
        // Predicated region
        $region49: #{tpu_custom_call.1} parent=47 // pred_check
          %p293 = pneg %p95
        $region50: #{tpu_custom_call.1} parent=47 // pred_check_branch
          %295 = sbr.rel (%p293) target = $region52
        $region51: #{tpu_custom_call.1} parent=47 // pred_region
          %296 = dma.done %s289, 384
        $region52: #{tpu_custom_call.1} parent=47 // pred_fallthru
          _
        // Predicated region
        $region53: #{tpu_custom_call.1} parent=47 // pred_check
          %p297 = pneg %p137
        $region54: #{tpu_custom_call.1} parent=47 // pred_check_branch
          %299 = sbr.rel (%p297) target = $region56
        $region55: #{tpu_custom_call.1} parent=47 // pred_region
          %300 = dma.done [#allocation5], 2048
        $region56: #{tpu_custom_call.1} parent=47 // pred_fallthru
          _
        %p301 = scmp.lt.s32.totalorder %s22, 1
        %s302 = scalar_select %p301, %s22, 1
        %s303 = scalar_lea.vmem %s0, %s302
        %p304 = pneg %p43
        %p305 = pneg %p40
        %p306 = scmp.lt.s32.totalorder %s22, 1
        %s307 = scalar_select %p306, %s22, 1
        %s308 = smul.addr %s307, 3
        %s309 = smul.addr %s308, 8
        %s310 = scalar_lea.vmem %s1, %s309
        %p311 = pneg %p69
        %p312 = pneg %p66
        %s313 = sand.u32 %s82, 1
        %s314 = scalar_lea.sflag [#allocation3], %s313
        %s315 = sand.u32 %s82, 1
        %s316 = smul.addr %s315, 24
        %s317 = scalar_lea.vmem [#allocation2], %s316
        %p318 = pneg %p95
        %p319 = pneg %p92
        %p320 = pneg %p116
        %p321 = pneg %p113
        %p322 = pneg %p137
        %p323 = pneg %p134
        %p324 = pneg %p158
        %p325 = pneg %p155
        %p326 = pneg %p179
        %p327 = pneg %p176
        %p328 = pneg %p205
        %p329 = pneg %p202
        %p330 = scmp.lt.s32.totalorder %s22, 1
        %s331 = scalar_select %p330, %s22, 1
        %s332 = scalar_lea.vmem %s7, %s331
        %p333 = scmp.lt.s32.totalorder %s22, 1
        %s334 = scalar_select %p333, %s22, 1
        %s335 = scalar_lea.vmem %s0, %s334
        %p336 = scmp.lt.s32.totalorder %s22, 1
        %s337 = scalar_select %p336, %s22, 1
        %s338 = smul.addr %s337, 3
        %s339 = smul.addr %s338, 8
        %s340 = scalar_lea.vmem %s1, %s339
        %p341 = scmp.lt.s32.totalorder %s22, 1
        %s342 = scalar_select %p341, %s22, 1
        %s343 = scalar_lea.vmem %s7, %s342
        %vm345 = vcmask 0
        %346 = vst.msk [vmem:[%s343] sm:$0x1] %vm345, 0.0
        %v347 = vld [vmem:[%s335] sm:$0x1]
        %v348 = vld [vmem:[%s340] sm:$0xff]
        %v349 = vld [vmem:[%s340 + $0x8] sm:$0xff]
        %v350 = vld [vmem:[%s340 + $0x10] sm:$0xff]
        %vm354 = vcmask 1046528
        %v355 = vrot.slane %v348, 1
        %v356 = vrot.slane %v349, 1
        %v357 = vsel %vm354, %v355, %v356
        %v358 = vrot.slane %v350, 1
        %v359 = vsel %vm354, %v356, %v358
        %360 = vrot.lane.b32.xlu0 %v357, 32
        %v361 = vpop.permute.xlu0 %360
        %362 = vrot.lane.b32.xlu0 %v359, 32
        %v363 = vpop.permute.xlu0 %362
        %vm366 = vcmask 1045504
        %v367 = vrot.slane %v348, 2
        %v368 = vrot.slane %v349, 2
        %v369 = vsel %vm366, %v367, %v368
        %v370 = vrot.slane %v350, 2
        %v371 = vsel %vm366, %v368, %v370
        %372 = vrot.lane.b32.xlu0 %v369, 64
        %v373 = vpop.permute.xlu0 %372
        %374 = vrot.lane.b32.xlu0 %v371, 64
        %v375 = vpop.permute.xlu0 %374
        %vm378 = vcmask 1044480
        %v379 = vrot.slane %v348, 3
        %v380 = vrot.slane %v349, 3
        %v381 = vsel %vm378, %v379, %v380
        %v382 = vrot.slane %v350, 3
        %v383 = vsel %vm378, %v380, %v382
        %384 = vrot.lane.b32.xlu0 %v381, 96
        %v385 = vpop.permute.xlu0 %384
        %386 = vrot.lane.b32.xlu0 %v383, 96
        %v387 = vpop.permute.xlu0 %386
        %vm390 = vcmask 261120
        %v391 = vsel %vm390, %v348, %v361
        %v392 = vsel %vm390, %v349, %v363
        %vm393 = vcmask 523264
        %v394 = vsel %vm393, %v391, %v373
        %v395 = vsel %vm393, %v392, %v375
        %vm396 = vcmask 785408
        %v397 = vsel %vm396, %v394, %v385
        %v398 = vsel %vm396, %v395, %v387
        %v399 = vpack.c.bf16 %v398, %v397
        %v400 = vld [vmem:[%s3] sm:$0xff]
        %v401 = vld [vmem:[%s3 + $0x8] sm:$0xff]
        %v402 = vld [vmem:[%s3 + $0x10] sm:$0xff]
        %v403 = vld [vmem:[%s3 + $0x18] sm:$0xff]
        %v404 = vld [vmem:[%s3 + $0x20] sm:$0xff]
        %v405 = vld [vmem:[%s3 + $0x28] sm:$0xff]
        %v406 = vld [vmem:[%s3 + $0x30] sm:$0xff]
        %v407 = vld [vmem:[%s3 + $0x38] sm:$0xff]
        %v408 = vld [vmem:[%s3 + $0x40] sm:$0xff]
        %v409 = vld [vmem:[%s3 + $0x48] sm:$0xff]
        %v410 = vld [vmem:[%s3 + $0x50] sm:$0xff]
        %v411 = vld [vmem:[%s3 + $0x58] sm:$0xff]
        %v412 = vld [vmem:[%s3 + $0x60] sm:$0xff]
        %v413 = vld [vmem:[%s3 + $0x68] sm:$0xff]
        %v414 = vld [vmem:[%s3 + $0x70] sm:$0xff]
        %v415 = vld [vmem:[%s3 + $0x78] sm:$0xff]
        %v416 = vunpack.c.l.bf16 %v399
        %v417 = vunpack.c.h.bf16 %v399
        %v418 = vsub.f32 %v397, %v416
        %v419 = vsub.f32 %v398, %v417
        %v420 = vpack.c.bf16 %v419, %v418
        %v437 = vunpack.c.l.b16 %v400
        %v438 = vunpack.c.h.b16 %v400
        %v439 = vunpack.c.l.b16 %v401
        %v440 = vunpack.c.h.b16 %v401
        %v441 = vunpack.c.l.b16 %v402
        %v442 = vunpack.c.h.b16 %v402
        %v443 = vunpack.c.l.b16 %v403
        %v444 = vunpack.c.h.b16 %v403
        %v445 = vunpack.c.l.b16 %v404
        %v446 = vunpack.c.h.b16 %v404
        %v447 = vunpack.c.l.b16 %v405
        %v448 = vunpack.c.h.b16 %v405
        %v449 = vunpack.c.l.b16 %v406
        %v450 = vunpack.c.h.b16 %v406
        %v451 = vunpack.c.l.b16 %v407
        %v452 = vunpack.c.h.b16 %v407
        %v453 = vunpack.c.l.b16 %v408
        %v454 = vunpack.c.h.b16 %v408
        %v455 = vunpack.c.l.b16 %v409
        %v456 = vunpack.c.h.b16 %v409
        %v457 = vunpack.c.l.b16 %v410
        %v458 = vunpack.c.h.b16 %v410
        %v459 = vunpack.c.l.b16 %v411
        %v460 = vunpack.c.h.b16 %v411
        %v461 = vunpack.c.l.b16 %v412
        %v462 = vunpack.c.h.b16 %v412
        %v463 = vunpack.c.l.b16 %v413
        %v464 = vunpack.c.h.b16 %v413
        %v465 = vunpack.c.l.b16 %v414
        %v466 = vunpack.c.h.b16 %v414
        %v467 = vunpack.c.l.b16 %v415
        %v468 = vunpack.c.h.b16 %v415
        %v469 = vpack.c.b16 %v439, %v437
        %v470 = vpack.c.b16 %v440, %v438
        %v471 = vpack.c.b16 %v443, %v441
        %v472 = vpack.c.b16 %v444, %v442
        %v473 = vpack.c.b16 %v447, %v445
        %v474 = vpack.c.b16 %v448, %v446
        %v475 = vpack.c.b16 %v451, %v449
        %v476 = vpack.c.b16 %v452, %v450
        %v477 = vpack.c.b16 %v455, %v453
        %v478 = vpack.c.b16 %v456, %v454
        %v479 = vpack.c.b16 %v459, %v457
        %v480 = vpack.c.b16 %v460, %v458
        %v481 = vpack.c.b16 %v463, %v461
        %v482 = vpack.c.b16 %v464, %v462
        %v483 = vpack.c.b16 %v467, %v465
        %v484 = vpack.c.b16 %v468, %v466
        %501 = vmatprep.subr.bf16.mxu0 %v470
        %502 = vmatpush1.bf16.msra.mxu0 %v469
        %503 = vmatprep.subr.bf16.mxu0 %v472
        %504 = vmatpush1.bf16.msra.mxu0 %v471
        %505 = vmatprep.subr.bf16.mxu0 %v474
        %506 = vmatpush1.bf16.msra.mxu0 %v473
        %507 = vmatprep.subr.bf16.mxu0 %v476
        %508 = vmatpush1.bf16.msra.mxu0 %v475
        %509 = vmatprep.subr.bf16.mxu0 %v478
        %510 = vmatpush1.bf16.msra.mxu0 %v477
        %511 = vmatprep.subr.bf16.mxu0 %v480
        %512 = vmatpush1.bf16.msra.mxu0 %v479
        %513 = vmatprep.subr.bf16.mxu0 %v482
        %514 = vmatpush1.bf16.msra.mxu0 %v481
        %515 = vmatprep.subr.bf16.mxu0 %v484
        %516 = vmatpush1.bf16.msra.mxu0 %v483
        %517 = vmatprep.subr.bf16.mxu0 0
        %518 = vmatpush1.bf16.msra.mxu0 0
        %519 = vmatprep.subr.bf16.mxu0 0
        %520 = vmatpush1.bf16.msra.mxu0 0
        %521 = vmatprep.subr.bf16.mxu0 0
        %522 = vmatpush1.bf16.msra.mxu0 0
        %523 = vmatprep.subr.bf16.mxu0 0
        %524 = vmatpush1.bf16.msra.mxu0 0
        %525 = vmatprep.subr.bf16.mxu0 0
        %526 = vmatpush1.bf16.msra.mxu0 0
        %527 = vmatprep.subr.bf16.mxu0 0
        %528 = vmatpush1.bf16.msra.mxu0 0
        %529 = vmatprep.subr.bf16.mxu0 0
        %530 = vmatpush1.bf16.msra.mxu0 0
        %531 = vmatprep.subr.bf16.mxu0 0
        %532 = vmatpush1.bf16.msra.mxu0 0
        %533 = vmatprep.mubr.bf16.mxu0 0
        %534 = vmatmul.mubr.bf16.gmra.mrb[0].mxu0 %v420
        %v535 = vpop.f32.mrb[0].mxu0
        %v536 = vadd.f32 0.0, %v535
        %v537 = vpop.f32.mrb[0].mxu0
        %v538 = vadd.f32 0.0, %v537
        %v539 = vpop.f32.mrb[0].mxu0
        %v540 = vadd.f32 0.0, %v539
        %v541 = vpop.f32.mrb[0].mxu0
        %v542 = vadd.f32 0.0, %v541
        %543 = vdwg.mxu0
        %544 = vmatprep.subr.bf16.mxu0 %v470
        %545 = vmatpush1.bf16.msra.mxu0 %v469
        %546 = vmatprep.subr.bf16.mxu0 %v472
        %547 = vmatpush1.bf16.msra.mxu0 %v471
        %548 = vmatprep.subr.bf16.mxu0 %v474
        %549 = vmatpush1.bf16.msra.mxu0 %v473
        %550 = vmatprep.subr.bf16.mxu0 %v476
        %551 = vmatpush1.bf16.msra.mxu0 %v475
        %552 = vmatprep.subr.bf16.mxu0 %v478
        %553 = vmatpush1.bf16.msra.mxu0 %v477
        %554 = vmatprep.subr.bf16.mxu0 %v480
        %555 = vmatpush1.bf16.msra.mxu0 %v479
        %556 = vmatprep.subr.bf16.mxu0 %v482
        %557 = vmatpush1.bf16.msra.mxu0 %v481
        %558 = vmatprep.subr.bf16.mxu0 %v484
        %559 = vmatpush1.bf16.msra.mxu0 %v483
        %560 = vmatprep.subr.bf16.mxu0 0
        %561 = vmatpush1.bf16.msra.mxu0 0
        %562 = vmatprep.subr.bf16.mxu0 0
        %563 = vmatpush1.bf16.msra.mxu0 0
        %564 = vmatprep.subr.bf16.mxu0 0
        %565 = vmatpush1.bf16.msra.mxu0 0
        %566 = vmatprep.subr.bf16.mxu0 0
        %567 = vmatpush1.bf16.msra.mxu0 0
        %568 = vmatprep.subr.bf16.mxu0 0
        %569 = vmatpush1.bf16.msra.mxu0 0
        %570 = vmatprep.subr.bf16.mxu0 0
        %571 = vmatpush1.bf16.msra.mxu0 0
        %572 = vmatprep.subr.bf16.mxu0 0
        %573 = vmatpush1.bf16.msra.mxu0 0
        %574 = vmatprep.subr.bf16.mxu0 0
        %575 = vmatpush1.bf16.msra.mxu0 0
        %576 = vmatprep.mubr.bf16.mxu0 0
        %577 = vmatmul.mubr.bf16.gmra.mrb[0].mxu0 %v399
        %v578 = vpop.f32.mrb[0].mxu0
        %v579 = vadd.f32 %v536, %v578
        %v580 = vpop.f32.mrb[0].mxu0
        %v581 = vadd.f32 %v538, %v580
        %v582 = vpop.f32.mrb[0].mxu0
        %v583 = vadd.f32 %v540, %v582
        %v584 = vpop.f32.mrb[0].mxu0
        %v585 = vadd.f32 %v542, %v584
        %586 = vdwg.mxu0
        %v587 = vld [vmem:[#allocation4] sm:$0xff]
        %v588 = vld [vmem:[#allocation4 + $0x8] sm:$0xff]
        %v589 = vld [vmem:[#allocation4 + $0x10] sm:$0xff]
        %v590 = vld [vmem:[#allocation4 + $0x18] sm:$0xff]
        %v591 = vld [vmem:[#allocation4 + $0x20] sm:$0xff]
        %v592 = vld [vmem:[#allocation4 + $0x28] sm:$0xff]
        %v593 = vld [vmem:[#allocation4 + $0x30] sm:$0xff]
        %v594 = vld [vmem:[#allocation4 + $0x38] sm:$0xff]
        %v595 = vld [vmem:[#allocation4 + $0x40] sm:$0xff]
        %v596 = vld [vmem:[#allocation4 + $0x48] sm:$0xff]
        %v597 = vld [vmem:[#allocation4 + $0x50] sm:$0xff]
        %v598 = vld [vmem:[#allocation4 + $0x58] sm:$0xff]
        %v599 = vld [vmem:[#allocation4 + $0x60] sm:$0xff]
        %v600 = vld [vmem:[#allocation4 + $0x68] sm:$0xff]
        %v601 = vld [vmem:[#allocation4 + $0x70] sm:$0xff]
        %v602 = vld [vmem:[#allocation4 + $0x78] sm:$0xff]
        %v619 = vunpack.c.l.b16 %v587
        %v620 = vunpack.c.h.b16 %v587
        %v621 = vunpack.c.l.b16 %v588
        %v622 = vunpack.c.h.b16 %v588
        %v623 = vunpack.c.l.b16 %v589
        %v624 = vunpack.c.h.b16 %v589
        %v625 = vunpack.c.l.b16 %v590
        %v626 = vunpack.c.h.b16 %v590
        %v627 = vunpack.c.l.b16 %v591
        %v628 = vunpack.c.h.b16 %v591
        %v629 = vunpack.c.l.b16 %v592
        %v630 = vunpack.c.h.b16 %v592
        %v631 = vunpack.c.l.b16 %v593
        %v632 = vunpack.c.h.b16 %v593
        %v633 = vunpack.c.l.b16 %v594
        %v634 = vunpack.c.h.b16 %v594
        %v635 = vunpack.c.l.b16 %v595
        %v636 = vunpack.c.h.b16 %v595
        %v637 = vunpack.c.l.b16 %v596
        %v638 = vunpack.c.h.b16 %v596
        %v639 = vunpack.c.l.b16 %v597
        %v640 = vunpack.c.h.b16 %v597
        %v641 = vunpack.c.l.b16 %v598
        %v642 = vunpack.c.h.b16 %v598
        %v643 = vunpack.c.l.b16 %v599
        %v644 = vunpack.c.h.b16 %v599
        %v645 = vunpack.c.l.b16 %v600
        %v646 = vunpack.c.h.b16 %v600
        %v647 = vunpack.c.l.b16 %v601
        %v648 = vunpack.c.h.b16 %v601
        %v649 = vunpack.c.l.b16 %v602
        %v650 = vunpack.c.h.b16 %v602
        %v651 = vpack.c.b16 %v621, %v619
        %v652 = vpack.c.b16 %v622, %v620
        %v653 = vpack.c.b16 %v625, %v623
        %v654 = vpack.c.b16 %v626, %v624
        %v655 = vpack.c.b16 %v629, %v627
        %v656 = vpack.c.b16 %v630, %v628
        %v657 = vpack.c.b16 %v633, %v631
        %v658 = vpack.c.b16 %v634, %v632
        %v659 = vpack.c.b16 %v637, %v635
        %v660 = vpack.c.b16 %v638, %v636
        %v661 = vpack.c.b16 %v641, %v639
        %v662 = vpack.c.b16 %v642, %v640
        %v663 = vpack.c.b16 %v645, %v643
        %v664 = vpack.c.b16 %v646, %v644
        %v665 = vpack.c.b16 %v649, %v647
        %v666 = vpack.c.b16 %v650, %v648
        %683 = vmatprep.subr.bf16.mxu0 %v652
        %684 = vmatpush1.bf16.msra.mxu0 %v651
        %685 = vmatprep.subr.bf16.mxu0 %v654
        %686 = vmatpush1.bf16.msra.mxu0 %v653
        %687 = vmatprep.subr.bf16.mxu0 %v656
        %688 = vmatpush1.bf16.msra.mxu0 %v655
        %689 = vmatprep.subr.bf16.mxu0 %v658
        %690 = vmatpush1.bf16.msra.mxu0 %v657
        %691 = vmatprep.subr.bf16.mxu0 %v660
        %692 = vmatpush1.bf16.msra.mxu0 %v659
        %693 = vmatprep.subr.bf16.mxu0 %v662
        %694 = vmatpush1.bf16.msra.mxu0 %v661
        %695 = vmatprep.subr.bf16.mxu0 %v664
        %696 = vmatpush1.bf16.msra.mxu0 %v663
        %697 = vmatprep.subr.bf16.mxu0 %v666
        %698 = vmatpush1.bf16.msra.mxu0 %v665
        %699 = vmatprep.subr.bf16.mxu0 0
        %700 = vmatpush1.bf16.msra.mxu0 0
        %701 = vmatprep.subr.bf16.mxu0 0
        %702 = vmatpush1.bf16.msra.mxu0 0
        %703 = vmatprep.subr.bf16.mxu0 0
        %704 = vmatpush1.bf16.msra.mxu0 0
        %705 = vmatprep.subr.bf16.mxu0 0
        %706 = vmatpush1.bf16.msra.mxu0 0
        %707 = vmatprep.subr.bf16.mxu0 0
        %708 = vmatpush1.bf16.msra.mxu0 0
        %709 = vmatprep.subr.bf16.mxu0 0
        %710 = vmatpush1.bf16.msra.mxu0 0
        %711 = vmatprep.subr.bf16.mxu0 0
        %712 = vmatpush1.bf16.msra.mxu0 0
        %713 = vmatprep.subr.bf16.mxu0 0
        %714 = vmatpush1.bf16.msra.mxu0 0
        %715 = vmatprep.mubr.bf16.mxu0 0
        %716 = vmatmul.mubr.bf16.gmra.mrb[0].mxu0 %v399
        %v717 = vpop.f32.mrb[0].mxu0
        %v718 = vadd.f32 0.0, %v717
        %v719 = vpop.f32.mrb[0].mxu0
        %v720 = vadd.f32 0.0, %v719
        %v721 = vpop.f32.mrb[0].mxu0
        %v722 = vadd.f32 0.0, %v721
        %v723 = vpop.f32.mrb[0].mxu0
        %v724 = vadd.f32 0.0, %v723
        %725 = vdwg.mxu0
        %v726 = vadd.f32 %v579, %v718
        %v727 = vadd.f32 %v581, %v720
        %v728 = vadd.f32 %v583, %v722
        %v729 = vadd.f32 %v585, %v724
        %v730 = vmul.f32 %v726, %v726
        %v731 = vmul.f32 %v728, %v728
        %v732 = vmul.f32 %v727, %v727
        %v733 = vmul.f32 %v729, %v729
        %v734 = vadd.f32 %v730, %v732
        %v735 = vadd.f32 %v731, %v733
        %v736 = vld [vmem:[%s5] sm:$0xff]
        %v737 = vld [vmem:[%s5 + $0x8] sm:$0xff]
        %v738 = vld [vmem:[%s5 + $0x10] sm:$0xff]
        %v739 = vld [vmem:[%s5 + $0x18] sm:$0xff]
        %v740 = vld [vmem:[%s5 + $0x20] sm:$0xff]
        %v741 = vld [vmem:[%s5 + $0x28] sm:$0xff]
        %v742 = vld [vmem:[%s5 + $0x30] sm:$0xff]
        %v743 = vld [vmem:[%s5 + $0x38] sm:$0xff]
        %v744 = vld [vmem:[%s5 + $0x40] sm:$0xff]
        %v745 = vld [vmem:[%s5 + $0x48] sm:$0xff]
        %v746 = vld [vmem:[%s5 + $0x50] sm:$0xff]
        %v747 = vld [vmem:[%s5 + $0x58] sm:$0xff]
        %v748 = vld [vmem:[%s5 + $0x60] sm:$0xff]
        %v749 = vld [vmem:[%s5 + $0x68] sm:$0xff]
        %v750 = vld [vmem:[%s5 + $0x70] sm:$0xff]
        %v751 = vld [vmem:[%s5 + $0x78] sm:$0xff]
        %752 = vmatprep.subr.mxu0 0.0
        %753 = vmatpush1.msra.mxu0 %v736
        %754 = vmatprep.subr.mxu0 0.0
        %755 = vmatpush1.msra.mxu0 %v737
        %756 = vmatprep.subr.mxu0 0.0
        %757 = vmatpush1.msra.mxu0 %v738
        %758 = vmatprep.subr.mxu0 0.0
        %759 = vmatpush1.msra.mxu0 %v739
        %760 = vmatprep.subr.mxu0 0.0
        %761 = vmatpush1.msra.mxu0 %v740
        %762 = vmatprep.subr.mxu0 0.0
        %763 = vmatpush1.msra.mxu0 %v741
        %764 = vmatprep.subr.mxu0 0.0
        %765 = vmatpush1.msra.mxu0 %v742
        %766 = vmatprep.subr.mxu0 0.0
        %767 = vmatpush1.msra.mxu0 %v743
        %768 = vmatprep.subr.mxu0 0.0
        %769 = vmatpush1.msra.mxu0 %v744
        %770 = vmatprep.subr.mxu0 0.0
        %771 = vmatpush1.msra.mxu0 %v745
        %772 = vmatprep.subr.mxu0 0.0
        %773 = vmatpush1.msra.mxu0 %v746
        %774 = vmatprep.subr.mxu0 0.0
        %775 = vmatpush1.msra.mxu0 %v747
        %776 = vmatprep.subr.mxu0 0.0
        %777 = vmatpush1.msra.mxu0 %v748
        %778 = vmatprep.subr.mxu0 0.0
        %779 = vmatpush1.msra.mxu0 %v749
        %780 = vmatprep.subr.mxu0 0.0
        %781 = vmatpush1.msra.mxu0 %v750
        %782 = vmatprep.subr.mxu0 0.0
        %783 = vmatpush1.msra.mxu0 %v751
        %784 = vmatprep.subr.mxu0 0.0
        %785 = vmatpush1.msra.mxu0 0.0
        %786 = vmatprep.subr.mxu0 0.0
        %787 = vmatpush1.msra.mxu0 0.0
        %788 = vmatprep.subr.mxu0 0.0
        %789 = vmatpush1.msra.mxu0 0.0
        %790 = vmatprep.subr.mxu0 0.0
        %791 = vmatpush1.msra.mxu0 0.0
        %792 = vmatprep.subr.mxu0 0.0
        %793 = vmatpush1.msra.mxu0 0.0
        %794 = vmatprep.subr.mxu0 0.0
        %795 = vmatpush1.msra.mxu0 0.0
        %796 = vmatprep.subr.mxu0 0.0
        %797 = vmatpush1.msra.mxu0 0.0
        %798 = vmatprep.subr.mxu0 0.0
        %799 = vmatpush1.msra.mxu0 0.0
        %800 = vmatprep.subr.mxu0 0.0
        %801 = vmatpush1.msra.mxu0 0.0
        %802 = vmatprep.subr.mxu0 0.0
        %803 = vmatpush1.msra.mxu0 0.0
        %804 = vmatprep.subr.mxu0 0.0
        %805 = vmatpush1.msra.mxu0 0.0
        %806 = vmatprep.subr.mxu0 0.0
        %807 = vmatpush1.msra.mxu0 0.0
        %808 = vmatprep.subr.mxu0 0.0
        %809 = vmatpush1.msra.mxu0 0.0
        %810 = vmatprep.subr.mxu0 0.0
        %811 = vmatpush1.msra.mxu0 0.0
        %812 = vmatprep.subr.mxu0 0.0
        %813 = vmatpush1.msra.mxu0 0.0
        %814 = vmatprep.subr.mxu0 0.0
        %815 = vmatpush1.msra.mxu0 0.0
        %816 = vmatprep.mubr.f32.mxu0 0.0
        %817 = vmatmul.mubr.f32.gmra.mrb[0].mxu0 %v734
        %v818 = vpop.f32.mrb[0].mxu0
        %v819 = vadd.f32 1e-06, %v818
        %v820 = vpop.f32.mrb[0].mxu0
        %821 = vmatprep.mubr.f32.mxu0 0.0
        %822 = vmatmul.mubr.f32.gmra.mrb[0].mxu0 %v735
        %v823 = vpop.f32.mrb[0].mxu0
        %v824 = vadd.f32 1e-06, %v823
        %v825 = vpop.f32.mrb[0].mxu0
        %826 = vdwg.mxu0
        %v827 = vlog2.pop %v819
        %v828 = vmul.f32 %v827, 0.6931472
        %v829 = vlog2.pop %v824
        %v830 = vmul.f32 %v829, 0.6931472
        %v831 = vld [vmem:[%s292] sm:$0xff]
        %v832 = vld [vmem:[%s292 + $0x8] sm:$0xff]
        %v833 = vld [vmem:[%s292 + $0x10] sm:$0xff]
        %v837 = vrot.slane %v831, 1
        %v838 = vrot.slane %v832, 1
        %v839 = vsel %vm354, %v837, %v838
        %v840 = vrot.slane %v833, 1
        %v841 = vsel %vm354, %v838, %v840
        %842 = vrot.lane.b32.xlu0 %v839, 32
        %v843 = vpop.permute.xlu0 %842
        %844 = vrot.lane.b32.xlu0 %v841, 32
        %v845 = vpop.permute.xlu0 %844
        %v848 = vrot.slane %v831, 2
        %v849 = vrot.slane %v832, 2
        %v850 = vsel %vm366, %v848, %v849
        %v851 = vrot.slane %v833, 2
        %v852 = vsel %vm366, %v849, %v851
        %853 = vrot.lane.b32.xlu0 %v850, 64
        %v854 = vpop.permute.xlu0 %853
        %855 = vrot.lane.b32.xlu0 %v852, 64
        %v856 = vpop.permute.xlu0 %855
        %v859 = vrot.slane %v831, 3
        %v860 = vrot.slane %v832, 3
        %v861 = vsel %vm378, %v859, %v860
        %v862 = vrot.slane %v833, 3
        %v863 = vsel %vm378, %v860, %v862
        %864 = vrot.lane.b32.xlu0 %v861, 96
        %v865 = vpop.permute.xlu0 %864
        %866 = vrot.lane.b32.xlu0 %v863, 96
        %v867 = vpop.permute.xlu0 %866
        %v870 = vsel %vm390, %v831, %v843
        %v871 = vsel %vm390, %v832, %v845
        %v872 = vsel %vm393, %v870, %v854
        %v873 = vsel %vm393, %v871, %v856
        %v874 = vsel %vm396, %v872, %v865
        %v875 = vsel %vm396, %v873, %v867
        %v876 = vpack.c.bf16 %v875, %v874
        %v877 = vunpack.c.l.bf16 %v876
        %v878 = vunpack.c.h.bf16 %v876
        %v879 = vsub.f32 %v874, %v877
        %v880 = vsub.f32 %v875, %v878
        %v881 = vpack.c.bf16 %v880, %v879
        %882 = vmatprep.subr.bf16.mxu0 %v470
        %883 = vmatpush1.bf16.msra.mxu0 %v469
        %884 = vmatprep.subr.bf16.mxu0 %v472
        %885 = vmatpush1.bf16.msra.mxu0 %v471
        %886 = vmatprep.subr.bf16.mxu0 %v474
        %887 = vmatpush1.bf16.msra.mxu0 %v473
        %888 = vmatprep.subr.bf16.mxu0 %v476
        %889 = vmatpush1.bf16.msra.mxu0 %v475
        %890 = vmatprep.subr.bf16.mxu0 %v478
        %891 = vmatpush1.bf16.msra.mxu0 %v477
        %892 = vmatprep.subr.bf16.mxu0 %v480
        %893 = vmatpush1.bf16.msra.mxu0 %v479
        %894 = vmatprep.subr.bf16.mxu0 %v482
        %895 = vmatpush1.bf16.msra.mxu0 %v481
        %896 = vmatprep.subr.bf16.mxu0 %v484
        %897 = vmatpush1.bf16.msra.mxu0 %v483
        %898 = vmatprep.subr.bf16.mxu0 0
        %899 = vmatpush1.bf16.msra.mxu0 0
        %900 = vmatprep.subr.bf16.mxu0 0
        %901 = vmatpush1.bf16.msra.mxu0 0
        %902 = vmatprep.subr.bf16.mxu0 0
        %903 = vmatpush1.bf16.msra.mxu0 0
        %904 = vmatprep.subr.bf16.mxu0 0
        %905 = vmatpush1.bf16.msra.mxu0 0
        %906 = vmatprep.subr.bf16.mxu0 0
        %907 = vmatpush1.bf16.msra.mxu0 0
        %908 = vmatprep.subr.bf16.mxu0 0
        %909 = vmatpush1.bf16.msra.mxu0 0
        %910 = vmatprep.subr.bf16.mxu0 0
        %911 = vmatpush1.bf16.msra.mxu0 0
        %912 = vmatprep.subr.bf16.mxu0 0
        %913 = vmatpush1.bf16.msra.mxu0 0
        %914 = vmatprep.mubr.bf16.mxu0 0
        %915 = vmatmul.mubr.bf16.gmra.mrb[0].mxu0 %v881
        %v916 = vpop.f32.mrb[0].mxu0
        %v917 = vadd.f32 0.0, %v916
        %v918 = vpop.f32.mrb[0].mxu0
        %v919 = vadd.f32 0.0, %v918
        %v920 = vpop.f32.mrb[0].mxu0
        %v921 = vadd.f32 0.0, %v920
        %v922 = vpop.f32.mrb[0].mxu0
        %v923 = vadd.f32 0.0, %v922
        %924 = vdwg.mxu0
        %925 = vmatprep.subr.bf16.mxu0 %v470
        %926 = vmatpush1.bf16.msra.mxu0 %v469
        %927 = vmatprep.subr.bf16.mxu0 %v472
        %928 = vmatpush1.bf16.msra.mxu0 %v471
        %929 = vmatprep.subr.bf16.mxu0 %v474
        %930 = vmatpush1.bf16.msra.mxu0 %v473
        %931 = vmatprep.subr.bf16.mxu0 %v476
        %932 = vmatpush1.bf16.msra.mxu0 %v475
        %933 = vmatprep.subr.bf16.mxu0 %v478
        %934 = vmatpush1.bf16.msra.mxu0 %v477
        %935 = vmatprep.subr.bf16.mxu0 %v480
        %936 = vmatpush1.bf16.msra.mxu0 %v479
        %937 = vmatprep.subr.bf16.mxu0 %v482
        %938 = vmatpush1.bf16.msra.mxu0 %v481
        %939 = vmatprep.subr.bf16.mxu0 %v484
        %940 = vmatpush1.bf16.msra.mxu0 %v483
        %941 = vmatprep.subr.bf16.mxu0 0
        %942 = vmatpush1.bf16.msra.mxu0 0
        %943 = vmatprep.subr.bf16.mxu0 0
        %944 = vmatpush1.bf16.msra.mxu0 0
        %945 = vmatprep.subr.bf16.mxu0 0
        %946 = vmatpush1.bf16.msra.mxu0 0
        %947 = vmatprep.subr.bf16.mxu0 0
        %948 = vmatpush1.bf16.msra.mxu0 0
        %949 = vmatprep.subr.bf16.mxu0 0
        %950 = vmatpush1.bf16.msra.mxu0 0
        %951 = vmatprep.subr.bf16.mxu0 0
        %952 = vmatpush1.bf16.msra.mxu0 0
        %953 = vmatprep.subr.bf16.mxu0 0
        %954 = vmatpush1.bf16.msra.mxu0 0
        %955 = vmatprep.subr.bf16.mxu0 0
        %956 = vmatpush1.bf16.msra.mxu0 0
        %957 = vmatprep.mubr.bf16.mxu0 0
        %958 = vmatmul.mubr.bf16.gmra.mrb[0].mxu0 %v876
        %v959 = vpop.f32.mrb[0].mxu0
        %v960 = vadd.f32 %v917, %v959
        %v961 = vpop.f32.mrb[0].mxu0
        %v962 = vadd.f32 %v919, %v961
        %v963 = vpop.f32.mrb[0].mxu0
        %v964 = vadd.f32 %v921, %v963
        %v965 = vpop.f32.mrb[0].mxu0
        %v966 = vadd.f32 %v923, %v965
        %967 = vdwg.mxu0
        %968 = vmatprep.subr.bf16.mxu0 %v652
        %969 = vmatpush1.bf16.msra.mxu0 %v651
        %970 = vmatprep.subr.bf16.mxu0 %v654
        %971 = vmatpush1.bf16.msra.mxu0 %v653
        %972 = vmatprep.subr.bf16.mxu0 %v656
        %973 = vmatpush1.bf16.msra.mxu0 %v655
        %974 = vmatprep.subr.bf16.mxu0 %v658
        %975 = vmatpush1.bf16.msra.mxu0 %v657
        %976 = vmatprep.subr.bf16.mxu0 %v660
        %977 = vmatpush1.bf16.msra.mxu0 %v659
        %978 = vmatprep.subr.bf16.mxu0 %v662
        %979 = vmatpush1.bf16.msra.mxu0 %v661
        %980 = vmatprep.subr.bf16.mxu0 %v664
        %981 = vmatpush1.bf16.msra.mxu0 %v663
        %982 = vmatprep.subr.bf16.mxu0 %v666
        %983 = vmatpush1.bf16.msra.mxu0 %v665
        %984 = vmatprep.subr.bf16.mxu0 0
        %985 = vmatpush1.bf16.msra.mxu0 0
        %986 = vmatprep.subr.bf16.mxu0 0
        %987 = vmatpush1.bf16.msra.mxu0 0
        %988 = vmatprep.subr.bf16.mxu0 0
        %989 = vmatpush1.bf16.msra.mxu0 0
        %990 = vmatprep.subr.bf16.mxu0 0
        %991 = vmatpush1.bf16.msra.mxu0 0
        %992 = vmatprep.subr.bf16.mxu0 0
        %993 = vmatpush1.bf16.msra.mxu0 0
        %994 = vmatprep.subr.bf16.mxu0 0
        %995 = vmatpush1.bf16.msra.mxu0 0
        %996 = vmatprep.subr.bf16.mxu0 0
        %997 = vmatpush1.bf16.msra.mxu0 0
        %998 = vmatprep.subr.bf16.mxu0 0
        %999 = vmatpush1.bf16.msra.mxu0 0
        %1000 = vmatprep.mubr.bf16.mxu0 0
        %1001 = vmatmul.mubr.bf16.gmra.mrb[0].mxu0 %v876
        %v1002 = vpop.f32.mrb[0].mxu0
        %v1003 = vadd.f32 0.0, %v1002
        %v1004 = vpop.f32.mrb[0].mxu0
        %v1005 = vadd.f32 0.0, %v1004
        %v1006 = vpop.f32.mrb[0].mxu0
        %v1007 = vadd.f32 0.0, %v1006
        %v1008 = vpop.f32.mrb[0].mxu0
        %v1009 = vadd.f32 0.0, %v1008
        %1010 = vdwg.mxu0
        %v1011 = vadd.f32 %v960, %v1003
        %v1012 = vadd.f32 %v962, %v1005
        %v1013 = vadd.f32 %v964, %v1007
        %v1014 = vadd.f32 %v966, %v1009
        %v1015 = vmul.f32 %v1011, %v1011
        %v1016 = vmul.f32 %v1013, %v1013
        %v1017 = vmul.f32 %v1012, %v1012
        %v1018 = vmul.f32 %v1014, %v1014
        %v1019 = vadd.f32 %v1015, %v1017
        %v1020 = vadd.f32 %v1016, %v1018
        %1021 = vmatprep.subr.mxu0 0.0
        %1022 = vmatpush1.msra.mxu0 %v736
        %1023 = vmatprep.subr.mxu0 0.0
        %1024 = vmatpush1.msra.mxu0 %v737
        %1025 = vmatprep.subr.mxu0 0.0
        %1026 = vmatpush1.msra.mxu0 %v738
        %1027 = vmatprep.subr.mxu0 0.0
        %1028 = vmatpush1.msra.mxu0 %v739
        %1029 = vmatprep.subr.mxu0 0.0
        %1030 = vmatpush1.msra.mxu0 %v740
        %1031 = vmatprep.subr.mxu0 0.0
        %1032 = vmatpush1.msra.mxu0 %v741
        %1033 = vmatprep.subr.mxu0 0.0
        %1034 = vmatpush1.msra.mxu0 %v742
        %1035 = vmatprep.subr.mxu0 0.0
        %1036 = vmatpush1.msra.mxu0 %v743
        %1037 = vmatprep.subr.mxu0 0.0
        %1038 = vmatpush1.msra.mxu0 %v744
        %1039 = vmatprep.subr.mxu0 0.0
        %1040 = vmatpush1.msra.mxu0 %v745
        %1041 = vmatprep.subr.mxu0 0.0
        %1042 = vmatpush1.msra.mxu0 %v746
        %1043 = vmatprep.subr.mxu0 0.0
        %1044 = vmatpush1.msra.mxu0 %v747
        %1045 = vmatprep.subr.mxu0 0.0
        %1046 = vmatpush1.msra.mxu0 %v748
        %1047 = vmatprep.subr.mxu0 0.0
        %1048 = vmatpush1.msra.mxu0 %v749
        %1049 = vmatprep.subr.mxu0 0.0
        %1050 = vmatpush1.msra.mxu0 %v750
        %1051 = vmatprep.subr.mxu0 0.0
        %1052 = vmatpush1.msra.mxu0 %v751
        %1053 = vmatprep.subr.mxu0 0.0
        %1054 = vmatpush1.msra.mxu0 0.0
        %1055 = vmatprep.subr.mxu0 0.0
        %1056 = vmatpush1.msra.mxu0 0.0
        %1057 = vmatprep.subr.mxu0 0.0
        %1058 = vmatpush1.msra.mxu0 0.0
        %1059 = vmatprep.subr.mxu0 0.0
        %1060 = vmatpush1.msra.mxu0 0.0
        %1061 = vmatprep.subr.mxu0 0.0
        %1062 = vmatpush1.msra.mxu0 0.0
        %1063 = vmatprep.subr.mxu0 0.0
        %1064 = vmatpush1.msra.mxu0 0.0
        %1065 = vmatprep.subr.mxu0 0.0
        %1066 = vmatpush1.msra.mxu0 0.0
        %1067 = vmatprep.subr.mxu0 0.0
        %1068 = vmatpush1.msra.mxu0 0.0
        %1069 = vmatprep.subr.mxu0 0.0
        %1070 = vmatpush1.msra.mxu0 0.0
        %1071 = vmatprep.subr.mxu0 0.0
        %1072 = vmatpush1.msra.mxu0 0.0
        %1073 = vmatprep.subr.mxu0 0.0
        %1074 = vmatpush1.msra.mxu0 0.0
        %1075 = vmatprep.subr.mxu0 0.0
        %1076 = vmatpush1.msra.mxu0 0.0
        %1077 = vmatprep.subr.mxu0 0.0
        %1078 = vmatpush1.msra.mxu0 0.0
        %1079 = vmatprep.subr.mxu0 0.0
        %1080 = vmatpush1.msra.mxu0 0.0
        %1081 = vmatprep.subr.mxu0 0.0
        %1082 = vmatpush1.msra.mxu0 0.0
        %1083 = vmatprep.subr.mxu0 0.0
        %1084 = vmatpush1.msra.mxu0 0.0
        %1085 = vmatprep.mubr.f32.mxu0 0.0
        %1086 = vmatmul.mubr.f32.gmra.mrb[0].mxu0 %v1019
        %v1087 = vpop.f32.mrb[0].mxu0
        %v1088 = vadd.f32 1e-06, %v1087
        %v1089 = vpop.f32.mrb[0].mxu0
        %1090 = vmatprep.mubr.f32.mxu0 0.0
        %1091 = vmatmul.mubr.f32.gmra.mrb[0].mxu0 %v1020
        %v1092 = vpop.f32.mrb[0].mxu0
        %v1093 = vadd.f32 1e-06, %v1092
        %v1094 = vpop.f32.mrb[0].mxu0
        %1095 = vdwg.mxu0
        %v1096 = vlog2.pop %v1088
        %v1097 = vmul.f32 %v1096, 0.6931472
        %v1098 = vlog2.pop %v1093
        %v1099 = vmul.f32 %v1098, 0.6931472
        %v1100 = vsub.f32 %v828, %v1097
        %v1101 = vsub.f32 %v830, %v1099
        %v1102 = vld [vmem:[%s6] sm:$0xff]
        %v1103 = vld [vmem:[%s6 + $0x8] sm:$0xff]
        %vm1104 = vcmask 130048
        %v1106 = vsel %vm1104, %v1100, 0
        %v1109 = vsel %vm1104, %v1101, 0
        %1111 = vmatprep.subr.mxu0 0.0
        %1112 = vmatpush1.msra.mxu0 %v1102
        %1113 = vmatprep.subr.mxu0 0.0
        %1114 = vmatpush1.msra.mxu0 %v1103
        %1115 = vmatprep.subr.mxu0 0.0
        %1116 = vmatpush1.msra.mxu0 0.0
        %1117 = vmatprep.subr.mxu0 0.0
        %1118 = vmatpush1.msra.mxu0 0.0
        %1119 = vmatprep.subr.mxu0 0.0
        %1120 = vmatpush1.msra.mxu0 0.0
        %1121 = vmatprep.subr.mxu0 0.0
        %1122 = vmatpush1.msra.mxu0 0.0
        %1123 = vmatprep.subr.mxu0 0.0
        %1124 = vmatpush1.msra.mxu0 0.0
        %1125 = vmatprep.subr.mxu0 0.0
        %1126 = vmatpush1.msra.mxu0 0.0
        %1127 = vmatprep.subr.mxu0 0.0
        %1128 = vmatpush1.msra.mxu0 0.0
        %1129 = vmatprep.subr.mxu0 0.0
        %1130 = vmatpush1.msra.mxu0 0.0
        %1131 = vmatprep.subr.mxu0 0.0
        %1132 = vmatpush1.msra.mxu0 0.0
        %1133 = vmatprep.subr.mxu0 0.0
        %1134 = vmatpush1.msra.mxu0 0.0
        %1135 = vmatprep.subr.mxu0 0.0
        %1136 = vmatpush1.msra.mxu0 0.0
        %1137 = vmatprep.subr.mxu0 0.0
        %1138 = vmatpush1.msra.mxu0 0.0
        %1139 = vmatprep.subr.mxu0 0.0
        %1140 = vmatpush1.msra.mxu0 0.0
        %1141 = vmatprep.subr.mxu0 0.0
        %1142 = vmatpush1.msra.mxu0 0.0
        %1143 = vmatprep.subr.mxu0 0.0
        %1144 = vmatpush1.msra.mxu0 0.0
        %1145 = vmatprep.subr.mxu0 0.0
        %1146 = vmatpush1.msra.mxu0 0.0
        %1147 = vmatprep.subr.mxu0 0.0
        %1148 = vmatpush1.msra.mxu0 0.0
        %1149 = vmatprep.subr.mxu0 0.0
        %1150 = vmatpush1.msra.mxu0 0.0
        %1151 = vmatprep.subr.mxu0 0.0
        %1152 = vmatpush1.msra.mxu0 0.0
        %1153 = vmatprep.subr.mxu0 0.0
        %1154 = vmatpush1.msra.mxu0 0.0
        %1155 = vmatprep.subr.mxu0 0.0
        %1156 = vmatpush1.msra.mxu0 0.0
        %1157 = vmatprep.subr.mxu0 0.0
        %1158 = vmatpush1.msra.mxu0 0.0
        %1159 = vmatprep.subr.mxu0 0.0
        %1160 = vmatpush1.msra.mxu0 0.0
        %1161 = vmatprep.subr.mxu0 0.0
        %1162 = vmatpush1.msra.mxu0 0.0
        %1163 = vmatprep.subr.mxu0 0.0
        %1164 = vmatpush1.msra.mxu0 0.0
        %1165 = vmatprep.subr.mxu0 0.0
        %1166 = vmatpush1.msra.mxu0 0.0
        %1167 = vmatprep.subr.mxu0 0.0
        %1168 = vmatpush1.msra.mxu0 0.0
        %1169 = vmatprep.subr.mxu0 0.0
        %1170 = vmatpush1.msra.mxu0 0.0
        %1171 = vmatprep.subr.mxu0 0.0
        %1172 = vmatpush1.msra.mxu0 0.0
        %1173 = vmatprep.subr.mxu0 0.0
        %1174 = vmatpush1.msra.mxu0 0.0
        %1175 = vmatprep.mubr.f32.mxu0 0.0
        %1176 = vmatmul.mubr.f32.gmra.mrb[0].mxu0 %v1106
        %v1177 = vpop.f32.mrb[0].mxu0
        %v1178 = vadd.f32 0.0, %v1177
        %v1179 = vpop.f32.mrb[0].mxu0
        %1180 = vmatprep.mubr.f32.mxu0 0.0
        %1181 = vmatmul.mubr.f32.gmra.mrb[0].mxu0 %v1109
        %v1182 = vpop.f32.mrb[0].mxu0
        %v1183 = vadd.f32 0.0, %v1182
        %v1184 = vpop.f32.mrb[0].mxu0
        %1185 = vdwg.mxu0
        %v1186 = vlaneseq
        %v1187 = vshrl.u32 %v1186, 7
        %v1188 = vadd.s32 %v1187, 8
        %v1189 = vstv 0
        %v1190 = vadd.s32 %v1187, %v1189
        %v1191 = vadd.s32 %v1188, %v1189
        %v1192 = vlaneseq
        %v1193 = vshrl.u32 %v1192, 7
        %v1194 = vsub.s32 0, %v1193
        %v1195 = vrot.slane %v347, %v1194
        %vm1196 = vcmp.lt.s32.totalorder %v1190, %v1195
        %vm1197 = vcmp.lt.s32.totalorder %v1191, %v1195
        %v1198 = vsel %vm1196, 1, 0
        %v1199 = vsel %vm1197, 1, 0
        %v1200 = vcvt.s32.f32 %v1198
        %v1201 = vcvt.s32.f32 %v1199
        %v1202 = vld [vmem:[%s343] sm:$0x1]
        %v1203 = vand.u32 2147483647, %v1178
        %v1204 = vand.u32 2147483647, %v1183
        %1206 = vset.pattern.permute.xlu0 0
        %1207 = vperm.xlu0 %1206, %v1200
        %v1208 = vpop.permute.xlu0 %1207
        %1211 = vset.pattern.permute.xlu0 0
        %1212 = vperm.xlu0 %1211, %v1201
        %v1213 = vpop.permute.xlu0 %1212
        %v1215 = vmul.f32 %v1203, %v1208
        %v1216 = vmul.f32 %v1204, %v1213
        %vm1217 = vcmask 64512
        %v1218 = vsel %vm1217, %v1215, 0.0
        %v1219 = vsel %vm1217, %v1216, 0.0
        %v1220 = vadd.f32 %v1218, %v1219
        %1221 = vadd.xlane.f32.xlu0 %v1220
        %v1222 = vpop.xlane.xlu0 %1221
        %v1223 = vrot.slane %v1222, 4
        %v1224 = vadd.f32 %v1222, %v1223
        %v1225 = vrot.slane %v1224, 2
        %v1226 = vadd.f32 %v1224, %v1225
        %v1227 = vrot.slane %v1226, 1
        %v1228 = vadd.f32 %v1226, %v1227
        %s1229 = vtos %v1228
        %v1230 = vstv %s1229
        %v1231 = vadd.f32 %v1202, %v1230
        %1232 = vst.msk [vmem:[%s343] sm:$0x1] %vm345, %v1231
        %p1233 = scmp.lt.s32.totalorder %s22, 1
        %s1234 = scalar_select %p1233, %s22, 1
        %s1235 = scalar_lea.vmem %s7, %s1234
        // Predicated region
        $region57: #{tpu_custom_call.1} parent=47 // pred_check
          %p1236 = pneg %p202
        $region58: #{tpu_custom_call.1} parent=47 // pred_check_branch
          %1238 = sbr.rel (%p1236) target = $region60
        $region59: #{tpu_custom_call.1} parent=47 // pred_region
          _
        $region60: #{tpu_custom_call.1} parent=47 // pred_fallthru
          _
      $region48: #{tpu_custom_call.1} parent=5 // pred_fallthru
        _
      %p1239 = scmp.le.s32.totalorder 2, %s17
      // Predicated region
      $region61: #{tpu_custom_call.1} parent=5 // pred_check
        %p1240 = pneg %p1239
      $region62: #{tpu_custom_call.1} parent=5 // pred_check_branch
        %1242 = sbr.rel (%p1240) target = $region64
      $region63: #{tpu_custom_call.1} parent=5 // pred_region
        %s1243 = ssub.s32 %s17, 2
        // Predicated region
        $region65: #{tpu_custom_call.1} parent=63 // pred_check
          %p1244 = pneg %p208
        $region66: #{tpu_custom_call.1} parent=63 // pred_check_branch
          %1246 = sbr.rel (%p1244) target = $region68
        $region67: #{tpu_custom_call.1} parent=63 // pred_region
          %p1247 = scmp.lt.s32.totalorder %s23, 1
          %s1248 = scalar_select %p1247, %s23, 1
          %s1249 = scalar_lea.vmem %s7, %s1248
        $region68: #{tpu_custom_call.1} parent=63 // pred_fallthru
          _
      $region64: #{tpu_custom_call.1} parent=5 // pred_fallthru
        _
    $region6: #{tpu_custom_call.1} parent=1 // loop_footer
      %s21 = sadd.s32 1, %s17
    $region7: #{tpu_custom_call.1} parent=1 // loop_footer_branch
      %16 = sbr.rel target = $region3
    $region8: #{tpu_custom_call.1} parent=1 // loop_exit
      _
    %1250 = vsyncpa [#allocation3], 1
    %s1251 = scalar_lea.sflag [#allocation3], 1
    %1252 = vsyncpa %s1251, 1
    %1253 = vsyncpa [#allocation5], 1

</llo_original>
